<compile_context>
chip_gen: v5e
topology: v5e:2x2
jax: 0.10.0
libtpu: 0.0.40
codegen_flags: <defaults>
</compile_context>

<pallas_src>
import functools

import jax
import jax.numpy as jnp
from jax import lax
from jax.experimental import pallas as pl
from jax.experimental.pallas import tpu as pltpu

FILTER_NUM = 64
WINDOW_SIZES = (2, 3, 4)
MAX_WINDOW = max(WINDOW_SIZES)                 # 4 taps
NUM_FEAT = len(WINDOW_SIZES) * FILTER_NUM      # 192 conv features
PACKED_FEAT = MAX_WINDOW * NUM_FEAT            # 768 packed matmul columns
_LANE = 128
_SUBLANE = 8
_TB_TARGET = 32                                # target batch rows per grid step
_V_CHUNK = 1024                                # vocab reduction chunk
_V_SINGLE_MAX = 2048                           # <= this: keep vocab as 1 chunk
_VMEM_BUDGET = 40 * 1024 * 1024                # stay well under v7x's 64 MiB


def _round_up(x, m):
    return ((x + m - 1) // m) * m


def _textcnn_kernel(x_ref, w_ref, b_ref, wl_ref, bl_ref, out_ref, acc_ref, *,
                    seq_len, l_pad, tb):
    """One (batch-tile, vocab-chunk) grid step.

    Rows of x_ref / acc_ref are time-major within the batch tile:
    row = t * tb + j,  t in [0, l_pad),  j in [0, tb).
    """
    vi = pl.program_id(1)

    # Single fused MXU matmul: (mb, tv) @ (tv, 768), f32 accumulation.
    y = jnp.dot(x_ref[...], w_ref[...], preferred_element_type=jnp.float32)

    @pl.when(vi == 0)
    def _init():                                   # first vocab chunk
        acc_ref[...] = y

    @pl.when(vi > 0)
    def _accumulate():                             # remaining chunks
        acc_ref[...] = acc_ref[...] + y

    @pl.when(vi == pl.num_programs(1) - 1)
    def _finalize():
        t_out = l_pad - (MAX_WINDOW - 1)           # == seq_len
        acc = acc_ref[...]                         # (l_pad*tb, 768)
        # Tap alignment: conv[t*tb+j] = sum_k acc[(t+k)*tb + j, tap-k lanes].
        # Row shifts are multiples of tb (multiple of 8) -> free sublane slices;
        # the 192-lane group extraction happens only here, once per batch tile.
        conv = acc[0:t_out * tb, 0:NUM_FEAT]
        for k in range(1, MAX_WINDOW):
            conv = conv + acc[k * tb:(k + t_out) * tb,
                              k * NUM_FEAT:(k + 1) * NUM_FEAT]
        conv = conv.reshape(t_out, tb, NUM_FEAT)   # layout-preserving split
        act = jnp.maximum(conv + b_ref[...].reshape(1, 1, NUM_FEAT), 0.0)

        # Zero positions past each window's valid range (t <= L - K) before the
        # max-pool; exact because ReLU output >= 0.  The limit depends only on
        # the lane (feature group), so two tiny iotas suffice.
        t_iota = lax.broadcasted_iota(jnp.int32, (t_out, 1, 1), 0)
        f_iota = lax.broadcasted_iota(jnp.int32, (1, 1, NUM_FEAT), 2)
        limit = jnp.where(f_iota < FILTER_NUM, seq_len - 2,
                          jnp.where(f_iota < 2 * FILTER_NUM,
                                    seq_len - 3, seq_len - 4))
        act = jnp.where(t_iota <= limit, act, 0.0)
        pooled = jnp.max(act, axis=0)              # (tb, 192) leading-axis reduce

        # Final Linear(192, fea_dim) + ReLU; lane-dense (f_pad % 128 == 0) store.
        out = jnp.dot(pooled, wl_ref[...],
                      preferred_element_type=jnp.float32) + bl_ref[...]
        out_ref[...] = jnp.maximum(out, 0.0).astype(out_ref.dtype)


def textcnn_forward(x, params, *, compute_dtype=jnp.float32):
    """x: (B, L, V) float32.  params: dict of weights.  Returns (B, fea_dim)."""
    B, L, V = x.shape
    fea_dim = params["wl"].shape[1]
    assert L >= MAX_WINDOW, "sequence must be at least as long as the largest window"

    l_pad = L + MAX_WINDOW - 1                 # room for tap shifts; no 8-round-up
    v_pad = _round_up(V, _LANE)
    tv = v_pad if v_pad <= _V_SINGLE_MAX else _V_CHUNK
    v_pad = _round_up(v_pad, tv)
    f_pad = _round_up(fea_dim, _LANE)
    itemsize = jnp.dtype(compute_dtype).itemsize

    # Batch tile: target 32 rows, but keep >= 2 tiles when possible (v7x has two
    # TensorCores sharing the "parallel" axis) and stay inside the VMEM budget.
    tb = min(_TB_TARGET, _round_up(B, _SUBLANE))
    if _round_up(B, _SUBLANE) // tb < 2 and tb > _SUBLANE:
        tb = max(_SUBLANE, _round_up(_round_up(B, _SUBLANE) // 2, _SUBLANE))

    def footprint(tb_):
        mb_ = tb_ * l_pad
        return (2 * mb_ * tv * itemsize            # x double-buffer
                + 2 * tv * PACKED_FEAT * itemsize  # packed conv weight
                + mb_ * PACKED_FEAT * 4            # f32 accumulator
                + 2 * NUM_FEAT * f_pad * 4 + 2 * tb_ * f_pad * 4
                + 4 * (NUM_FEAT + f_pad) * 4)

    while tb > _SUBLANE and footprint(tb) > _VMEM_BUDGET:
        tb = max(_SUBLANE, _round_up(tb // 2, _SUBLANE))

    b_pad = _round_up(B, tb)
    b_tiles = b_pad // tb
    mb = tb * l_pad

    # --- wrapper-side packing / padding (layout plumbing, zero-filled) ------
    xp = jnp.pad(x.astype(jnp.float32),
                 ((0, b_pad - B), (0, l_pad - L), (0, v_pad - V)))
    # Time-major within each batch tile: row = (tile*l_pad + t)*tb + j.
    x_flat = (xp.reshape(b_tiles, tb, l_pad, v_pad)
                .transpose(0, 2, 1, 3)
                .reshape(b_tiles * mb, v_pad)
                .astype(compute_dtype))

    # Pack the three conv weights tap-major into (v_pad, 768):
    # column k*192 + g*64 + f  holds  w{K_g}[k, v, f]  (zero where k >= K_g).
    w_pack = jnp.zeros((MAX_WINDOW, v_pad, NUM_FEAT), jnp.float32)
    for gi, K in enumerate(WINDOW_SIZES):
        w_pack = w_pack.at[:K, :V, gi * FILTER_NUM:(gi + 1) * FILTER_NUM].set(
            params[f"w{K}"].astype(jnp.float32))
    w_pack = (w_pack.transpose(1, 0, 2)
                    .reshape(v_pad, PACKED_FEAT)
                    .astype(compute_dtype))

    b_pack = jnp.concatenate(
        [params[f"b{K}"].astype(jnp.float32).reshape(1, FILTER_NUM)
         for K in WINDOW_SIZES], axis=1)                           # (1, 192)
    wl_pad = jnp.zeros((NUM_FEAT, f_pad), jnp.float32
                       ).at[:, :fea_dim].set(params["wl"].astype(jnp.float32))
    bl_pad = jnp.zeros((1, f_pad), jnp.float32
                       ).at[:, :fea_dim].set(
                           params["bl"].astype(jnp.float32).reshape(1, fea_dim))

    grid = (b_tiles, v_pad // tv)
    kernel = functools.partial(_textcnn_kernel, seq_len=L, l_pad=l_pad, tb=tb)
    vmem_limit = int(min(64 * 1024 * 1024,
                         max(32 * 1024 * 1024, 1.3 * footprint(tb))))

    out = pl.pallas_call(
        kernel,
        out_shape=jax.ShapeDtypeStruct((b_pad, f_pad), jnp.float32),
        grid_spec=pltpu.PrefetchScalarGridSpec(
            num_scalar_prefetch=0,
            grid=grid,
            in_specs=[
                pl.BlockSpec((mb, tv), lambda i, v: (i, v)),             # x (flat)
                pl.BlockSpec((tv, PACKED_FEAT), lambda i, v: (v, 0)),    # conv w
                pl.BlockSpec((1, NUM_FEAT), lambda i, v: (0, 0)),        # conv b
                pl.BlockSpec((NUM_FEAT, f_pad), lambda i, v: (0, 0)),    # linear w
                pl.BlockSpec((1, f_pad), lambda i, v: (0, 0)),           # linear b
            ],
            out_specs=pl.BlockSpec((tb, f_pad), lambda i, v: (i, 0)),
            scratch_shapes=[pltpu.VMEM((mb, PACKED_FEAT), jnp.float32)],
        ),
        compiler_params=pltpu.CompilerParams(
            dimension_semantics=("parallel", "arbitrary"),
            vmem_limit_bytes=vmem_limit,
        ),
    )(x_flat, w_pack, b_pack, wl_pad, bl_pad)

    return out[:B, :fea_dim]


def init_params(key, vocab_size, fea_dim):
    """Deterministic synthetic parameters matching TextCNN's shapes.

    PyTorch conv weight (64, 1, K, V) is stored here as (K, V, 64);
    PyTorch linear weight (fea_dim, 192) is stored here as (192, fea_dim).
    """
    ks = jax.random.split(key, 8)
    p = {}
    for i, K in enumerate(WINDOW_SIZES):
        scale = 1.0 / jnp.sqrt(K * vocab_size)
        p[f"w{K}"] = (jax.random.normal(ks[2 * i], (K, vocab_size, FILTER_NUM),
                                        jnp.float32) * scale)
        p[f"b{K}"] = (jax.random.normal(ks[2 * i + 1], (1, FILTER_NUM),
                                        jnp.float32) * scale)
    in_f = len(WINDOW_SIZES) * FILTER_NUM
    scale = 1.0 / jnp.sqrt(in_f)
    p["wl"] = jax.random.normal(ks[6], (in_f, fea_dim), jnp.float32) * scale
    p["bl"] = jax.random.normal(ks[7], (1, fea_dim), jnp.float32) * scale
    return p


def textcnn_reference(x, params):
    """Pure-JAX reference mirroring the PyTorch forward."""
    feats = []
    B, L, V = x.shape
    for K in WINDOW_SIZES:
        T = L - K + 1
        acc = jnp.zeros((B, T, FILTER_NUM), jnp.float32)
        for k in range(K):
            acc = acc + jnp.einsum("btv,vf->btf", x[:, k:k + T, :],
                                   params[f"w{K}"][k],
                                   precision=lax.Precision.HIGHEST)
        acc = jax.nn.relu(acc + params[f"b{K}"].reshape(1, 1, FILTER_NUM))
        feats.append(jnp.max(acc, axis=1))
    fea = jnp.concatenate(feats, axis=1)
    y = jnp.dot(fea, params["wl"], precision=lax.Precision.HIGHEST) + params["bl"]
    return jax.nn.relu(y)


if __name__ == "__main__":
    B, L = 16, 16         # batch, sequence length (small demo shapes)
    vocab_size = 128      # width of one-hot / embedding axis consumed by conv
    fea_dim = 32          # output feature dim

    key = jax.random.PRNGKey(0)
    k_x, k_p = jax.random.split(key)
    x = jax.random.normal(k_x, (B, L, vocab_size), jnp.float32)
    params = init_params(k_p, vocab_size, fea_dim)

    ref = textcnn_reference(x, params)

    # f32 path (tolerance absorbs MXU matmul precision / accumulation order).
    out = jax.block_until_ready(textcnn_forward(x, params))
    assert out.shape == (B, fea_dim)
    assert jnp.allclose(out, ref, atol=2e-2, rtol=2e-2), \
        float(jnp.max(jnp.abs(out - ref)))

    # bf16 inputs/weights with f32 accumulation (the recommended fast path).
    out_bf16 = jax.block_until_ready(
        textcnn_forward(x, params, compute_dtype=jnp.bfloat16))
    assert out_bf16.shape == (B, fea_dim)
    assert jnp.allclose(out_bf16, ref, atol=1e-1, rtol=1e-1), \
        float(jnp.max(jnp.abs(out_bf16 - ref)))

    print("KERNEL_OK")
</pallas_src>

<mosaic_0001>
module attributes {stable_mosaic.version = 11 : i64} {
  func.func @_textcnn_kernel(%arg0: i32, %arg1: i32, %arg2: memref<152x128xf32, #tpu.memory_space<vmem>>, %arg3: memref<128x768xf32, #tpu.memory_space<vmem>>, %arg4: memref<1x192xf32, #tpu.memory_space<vmem>>, %arg5: memref<192x128xf32, #tpu.memory_space<vmem>>, %arg6: memref<1x128xf32, #tpu.memory_space<vmem>>, %arg7: memref<8x128xf32, #tpu.memory_space<vmem>>, %arg8: memref<152x768xf32, #tpu.memory_space<vmem>>) attributes {dimension_semantics = [#tpu.dimension_semantics<parallel>, #tpu.dimension_semantics<arbitrary>], iteration_bounds = array<i64: 2, 1>, scalar_prefetch = 0 : i64, scratch_operands = 1 : i64, tpu.core_type = #tpu.core_type<tc>, window_params = [{transform_indices = @transform_0, window_bounds = array<i64: 152, 128>}, {transform_indices = @transform_1, window_bounds = array<i64: 128, 768>}, {pipeline_mode = #tpu.pipeline_mode<synchronous>, transform_indices = @transform_2, window_bounds = array<i64: 1, 192>}, {pipeline_mode = #tpu.pipeline_mode<synchronous>, transform_indices = @transform_3, window_bounds = array<i64: 192, 128>}, {pipeline_mode = #tpu.pipeline_mode<synchronous>, transform_indices = @transform_4, window_bounds = array<i64: 1, 128>}, {transform_indices = @transform_5, window_bounds = array<i64: 8, 128>}]} {
    %c0 = arith.constant 0 : index
    %c0_0 = arith.constant 0 : index
    %0 = vector.load %arg2[%c0, %c0_0] : memref<152x128xf32, #tpu.memory_space<vmem>>, vector<152x128xf32>
    %c0_1 = arith.constant 0 : index
    %c0_2 = arith.constant 0 : index
    %1 = vector.load %arg3[%c0_1, %c0_2] : memref<128x768xf32, #tpu.memory_space<vmem>>, vector<128x768xf32>
    %cst = arith.constant dense<0.000000e+00> : vector<152x768xf32>
    %2 = tpu.matmul %0, %1, %cst {dimension_numbers = #tpu.dot_dimension_numbers<[1], [0], [0], [1], [0, 0, 1, 1], [], []>} : vector<152x128xf32>, vector<128x768xf32>, vector<152x768xf32> -> vector<152x768xf32>
    %c0_i32 = arith.constant 0 : i32
    %3 = arith.cmpi eq, %arg1, %c0_i32 : i32
    %4 = arith.extui %3 : i1 to i32
    %c0_i32_3 = arith.constant 0 : i32
    %5 = arith.cmpi ne, %4, %c0_i32_3 : i32
    scf.if %5 {
      %c0_8 = arith.constant 0 : index
      %c0_9 = arith.constant 0 : index
      %12 = vector.load %arg8[%c0_8, %c0_9] : memref<152x768xf32, #tpu.memory_space<vmem>>, vector<152x768xf32>
      tpu.vector_store %arg8[%c0_8, %c0_9], %2 {strides = array<i32>} : memref<152x768xf32, #tpu.memory_space<vmem>>, vector<152x768xf32>,
    } else {
    }
    %c0_i32_4 = arith.constant 0 : i32
    %6 = arith.cmpi sgt, %arg1, %c0_i32_4 : i32
    %7 = arith.extui %6 : i1 to i32
    %c0_i32_5 = arith.constant 0 : i32
    %8 = arith.cmpi ne, %7, %c0_i32_5 : i32
    scf.if %8 {
      %c0_8 = arith.constant 0 : index
      %c0_9 = arith.constant 0 : index
      %12 = vector.load %arg8[%c0_8, %c0_9] : memref<152x768xf32, #tpu.memory_space<vmem>>, vector<152x768xf32>
      %13 = arith.addf %12, %2 : vector<152x768xf32>
      %c0_10 = arith.constant 0 : index
      %c0_11 = arith.constant 0 : index
      %14 = vector.load %arg8[%c0_10, %c0_11] : memref<152x768xf32, #tpu.memory_space<vmem>>, vector<152x768xf32>
      tpu.vector_store %arg8[%c0_10, %c0_11], %13 {strides = array<i32>} : memref<152x768xf32, #tpu.memory_space<vmem>>, vector<152x768xf32>,
    } else {
    }
    %c0_i32_6 = arith.constant 0 : i32
    %9 = arith.cmpi eq, %arg1, %c0_i32_6 : i32
    %10 = arith.extui %9 : i1 to i32
    %c0_i32_7 = arith.constant 0 : i32
    %11 = arith.cmpi ne, %10, %c0_i32_7 : i32
    scf.if %11 {
      %c0_8 = arith.constant 0 : index
      %c0_9 = arith.constant 0 : index
      %12 = vector.load %arg8[%c0_8, %c0_9] : memref<152x768xf32, #tpu.memory_space<vmem>>, vector<152x768xf32>
      %13 = vector.extract_strided_slice %12 {offsets = [0, 0], sizes = [128, 192], strides = [1, 1]} : vector<152x768xf32> to vector<128x192xf32>
      %14 = vector.extract_strided_slice %12 {offsets = [8, 192], sizes = [128, 192], strides = [1, 1]} : vector<152x768xf32> to vector<128x192xf32>
      %15 = arith.addf %13, %14 : vector<128x192xf32>
      %16 = vector.extract_strided_slice %12 {offsets = [16, 384], sizes = [128, 192], strides = [1, 1]} : vector<152x768xf32> to vector<128x192xf32>
      %17 = arith.addf %15, %16 : vector<128x192xf32>
      %18 = vector.extract_strided_slice %12 {offsets = [24, 576], sizes = [128, 192], strides = [1, 1]} : vector<152x768xf32> to vector<128x192xf32>
      %19 = arith.addf %17, %18 : vector<128x192xf32>
      %20 = vector.shape_cast %19 : vector<128x192xf32> to vector<16x8x192xf32>
      %c0_10 = arith.constant 0 : index
      %c0_11 = arith.constant 0 : index
      %21 = vector.load %arg4[%c0_10, %c0_11] : memref<1x192xf32, #tpu.memory_space<vmem>>, vector<1x192xf32>
      %22 = vector.shape_cast %21 : vector<1x192xf32> to vector<1x1x192xf32>
      %23 = vector.broadcast %22 : vector<1x1x192xf32> to vector<16x8x192xf32>
      %24 = arith.addf %20, %23 : vector<16x8x192xf32>
      %cst_12 = arith.constant 0.000000e+00 : f32
      %25 = vector.broadcast %cst_12 : f32 to vector<16x8x192xf32>
      %26 = arith.maximumf %24, %25 : vector<16x8x192xf32>
      %27 = tpu.iota {dimensions = array<i32: 0>} : vector<16x1x1xi32>
      %28 = tpu.iota {dimensions = array<i32: 2>} : vector<1x1x192xi32>
      %c64_i32 = arith.constant 64 : i32
      %29 = vector.broadcast %c64_i32 : i32 to vector<1x1x192xi32>
      %30 = arith.cmpi slt, %28, %29 : vector<1x1x192xi32>
      %c128_i32 = arith.constant 128 : i32
      %31 = vector.broadcast %c128_i32 : i32 to vector<1x1x192xi32>
      %32 = arith.cmpi slt, %28, %31 : vector<1x1x192xi32>
      %c13_i32 = arith.constant 13 : i32
      %c12_i32 = arith.constant 12 : i32
      %33 = vector.broadcast %c13_i32 : i32 to vector<1x1x192xi32>
      %34 = vector.broadcast %c12_i32 : i32 to vector<1x1x192xi32>
      %35 = arith.select %32, %33, %34 : vector<1x1x192xi1>, vector<1x1x192xi32>
      %c14_i32 = arith.constant 14 : i32
      %36 = vector.broadcast %c14_i32 : i32 to vector<1x1x192xi32>
      %37 = arith.select %30, %36, %35 : vector<1x1x192xi1>, vector<1x1x192xi32>
      %38 = vector.broadcast %27 : vector<16x1x1xi32> to vector<16x1x192xi32>
      %39 = vector.broadcast %37 : vector<1x1x192xi32> to vector<16x1x192xi32>
      %40 = arith.cmpi sle, %38, %39 : vector<16x1x192xi32>
      %cst_13 = arith.constant 0.000000e+00 : f32
      %41 = vector.shape_cast %40 : vector<16x1x192xi1> to vector<16x1x192xi1>
      %42 = vector.broadcast %41 : vector<16x1x192xi1> to vector<16x8x192xi1>
      %43 = vector.broadcast %cst_13 : f32 to vector<16x8x192xf32>
      %44 = arith.select %42, %26, %43 : vector<16x8x192xi1>, vector<16x8x192xf32>
      %cst_14 = arith.constant dense<0xFF800000> : vector<8x192xf32>
      %45 = vector.multi_reduction <maximumf>, %44, %cst_14 [0] : vector<16x8x192xf32> to vector<8x192xf32>
      %c0_15 = arith.constant 0 : index
      %c0_16 = arith.constant 0 : index
      %46 = vector.load %arg5[%c0_15, %c0_16] : memref<192x128xf32, #tpu.memory_space<vmem>>, vector<192x128xf32>
      %cst_17 = arith.constant dense<0.000000e+00> : vector<8x128xf32>
      %47 = tpu.matmul %45, %46, %cst_17 {dimension_numbers = #tpu.dot_dimension_numbers<[1], [0], [0], [1], [0, 0, 1, 1], [], []>} : vector<8x192xf32>, vector<192x128xf32>, vector<8x128xf32> -> vector<8x128xf32>
      %c0_18 = arith.constant 0 : index
      %c0_19 = arith.constant 0 : index
      %48 = vector.load %arg6[%c0_18, %c0_19] : memref<1x128xf32, #tpu.memory_space<vmem>>, vector<1x128xf32>
      %49 = vector.broadcast %48 : vector<1x128xf32> to vector<8x128xf32>
      %50 = arith.addf %47, %49 : vector<8x128xf32>
      %cst_20 = arith.constant 0.000000e+00 : f32
      %51 = vector.broadcast %cst_20 : f32 to vector<8x128xf32>
      %52 = arith.maximumf %50, %51 : vector<8x128xf32>
      %c0_21 = arith.constant 0 : index
      %c0_22 = arith.constant 0 : index
      %53 = vector.load %arg7[%c0_21, %c0_22] : memref<8x128xf32, #tpu.memory_space<vmem>>, vector<8x128xf32>
      tpu.vector_store %arg7[%c0_21, %c0_22], %52 {strides = array<i32>} : memref<8x128xf32, #tpu.memory_space<vmem>>, vector<8x128xf32>,
    } else {
    }
    return
  }
  func.func @transform_0(%arg0: i32, %arg1: i32) -> (i32, i32) {
    %c0_i32 = arith.constant 0 : i32
    return %arg0, %arg1 : i32, i32
  }
  func.func @transform_1(%arg0: i32, %arg1: i32) -> (i32, i32) {
    %c0_i32 = arith.constant 0 : i32
    %c0_i32_0 = arith.constant 0 : i32
    return %arg1, %c0_i32 : i32, i32
  }
  func.func @transform_2(%arg0: i32, %arg1: i32) -> (i32, i32) {
    %c0_i32 = arith.constant 0 : i32
    %c0_i32_0 = arith.constant 0 : i32
    %c0_i32_1 = arith.constant 0 : i32
    return %c0_i32, %c0_i32_0 : i32, i32
  }
  func.func @transform_3(%arg0: i32, %arg1: i32) -> (i32, i32) {
    %c0_i32 = arith.constant 0 : i32
    %c0_i32_0 = arith.constant 0 : i32
    %c0_i32_1 = arith.constant 0 : i32
    return %c0_i32, %c0_i32_0 : i32, i32
  }
  func.func @transform_4(%arg0: i32, %arg1: i32) -> (i32, i32) {
    %c0_i32 = arith.constant 0 : i32
    %c0_i32_0 = arith.constant 0 : i32
    %c0_i32_1 = arith.constant 0 : i32
    return %c0_i32, %c0_i32_0 : i32, i32
  }
  func.func @transform_5(%arg0: i32, %arg1: i32) -> (i32, i32) {
    %c0_i32 = arith.constant 0 : i32
    %c0_i32_0 = arith.constant 0 : i32
    return %arg0, %c0_i32 : i32, i32
  }
}

</mosaic_0001>

<llo_original>
// kernel: tpu_custom_call.1
$region0: #{tpu_custom_call.1}
  #allocation0 [shape = 'u32[]', space=smem, size = 0x4, offset = 0x4, fixed_abs, tag = 'smem constant byte address 0x4 - core index']
  #allocation1 [shape = 'u32[72,128]{1,0:T(1,128)}', space=vmem, size = 0x9000, scoped, tag = 'internal scratch']
  #allocation2 [shape = 'f32[152,768]{1,0:T(8,128)}', space=vmem, size = 0x72000, scoped, tag = 'scratch operand']
  %s0 = inlined_call_operand.hbm [shape: f32[304,128], index: 0, kind: input, shape index: {}]
  %s1 = inlined_call_operand.hbm [shape: f32[128,768], index: 1, kind: input, shape index: {}]
  %s2 = inlined_call_operand.hbm [shape: f32[1,192], index: 2, kind: input, shape index: {}]
  %s3 = inlined_call_operand.hbm [shape: f32[192,128], index: 3, kind: input, shape index: {}]
  %s4 = inlined_call_operand.vmem [shape: f32[1,128], index: 4, kind: input, shape index: {}]
  %s5 = inlined_call_operand.hbm [shape: f32[16,128], index: 5, kind: output, shape index: {}]
  %s6 = sld [smem:[#allocation0]]
  $region81: #{tpu_custom_call.1} parent=0
    _
  %s8 = ssub.s32 1, %s6
  %s9 = scalar_select 0, %s8, %s6
  $region1: #{tpu_custom_call.1} parent=0
    #allocation3 [shape = 'u8[155648]{0}', space=vmem, size = 0x26000, scoped, tag = 'input window, operand 0']
    #allocation4 [shape = 's32[2]{0}', space=sflag, size = 0x8, scoped, tag = 'scoped memory for tpu_custom_call.1']
    #allocation5 [shape = 's32[2]{0}', space=sflag, size = 0x8, scoped, tag = 'scoped memory for tpu_custom_call.1']
    #allocation6 [shape = 'u8[393216]{0}', space=vmem, size = 0x60000, scoped, tag = 'input window, operand 1, single buffered']
    #allocation7 [shape = 's32[1]{0}', space=sflag, size = 0x4, scoped, tag = 'scoped memory for tpu_custom_call.1']
    #allocation8 [shape = 'u8[1024]{0}', space=vmem, size = 0x400, scoped, tag = 'input window, operand 2, single buffered']
    #allocation9 [shape = 'u8[98304]{0}', space=vmem, size = 0x18000, scoped, tag = 'input window, operand 3, single buffered']
    #allocation10 [shape = 's32[1]{0}', space=sflag, size = 0x4, scoped, tag = 'scoped memory for tpu_custom_call.1']
    #allocation11 [shape = 'u8[8192]{0}', space=vmem, size = 0x2000, scoped, tag = 'output window, operand 0']
    %10 = vsyncpa [#allocation4], 0
    %s11 = scalar_lea.sflag [#allocation4], 1
    %12 = vsyncpa %s11, 0
    %13 = vsyncpa [#allocation7], 0
    %14 = vsyncpa [#allocation10], 0
    %15 = vsyncpa [#allocation5], 0
    %s16 = scalar_lea.sflag [#allocation5], 1
    %17 = vsyncpa %s16, 0
    loop: start=0, step=1, limit=4
    $region2: #{tpu_custom_call.1} parent=1 // loop_pre_header
      _
    $region3: #{tpu_custom_call.1} parent=1 // loop_header
      %s19 = sphi 0, %s23
      %p20 = scmp.ge.s32.totalorder %s19, 4
      %s26 = sphi 0, %s38
      %s27 = sphi 0, %s34
      %s28 = sphi 0, %s26
      %s29 = sphi 0, %s27
      %s30 = sphi 0, %s28
      %s31 = sphi 0, %s29
      %s43 = sphi 0, %s45
      %s46 = sphi 0, %s43
      %s47 = sphi 0, %s46
      %s63 = sphi 0, %s47
      %s69 = sphi 0, %s71
      %s72 = sphi 0, %s69
      %s73 = sphi 0, %s72
      %s89 = sphi 0, %s73
      %s93 = sphi 0, %s93
      %s95 = sphi 0, %s93
      %s96 = sphi 0, %s95
      %s110 = sphi 0, %s96
      %s114 = sphi 0, %s114
      %s116 = sphi 0, %s114
      %s117 = sphi 0, %s116
      %s131 = sphi 0, %s117
      %s135 = sphi 0, %s135
      %s137 = sphi 0, %s135
      %s138 = sphi 0, %s137
      %s152 = sphi 0, %s138
      %s158 = sphi 0, %s160
      %s161 = sphi 0, %s158
      %s162 = sphi 0, %s161
      %s178 = sphi 0, %s162
    $region4: #{tpu_custom_call.1} parent=1 // loop_header_branch
      %22 = sbr.rel (%p20) target = $region8
    $region5: #{tpu_custom_call.1} parent=1 // loop_body
      %s24 = ssub.s32 %s19, 1
      %s25 = ssub.s32 %s19, 2
      %s32 = sadd.s32 1, %s27
      %p33 = scmp.ge.s32.totalorder %s32, 1
      %s34 = scalar_select %p33, 0, %s32
      %s35 = sadd.s32 1, %s26
      %s36 = scalar_select %p33, %s35, %s26
      %p37 = scmp.ge.s32.totalorder %s36, 2
      %s38 = scalar_select %p37, 0, %s36
      %s39 = ssub.s32 %s26, %s38
      %s40 = ssub.s32 %s27, %s34
      %s41 = sor.u32 %s39, %s40
      %p42 = scmp.eq.s32.totalorder %s41, 0
      %s44 = sadd.s32 %s43, 1
      %s45 = scalar_select %p42, %s43, %s44
      %p48 = pneg %p42
      %p49 = scmp.eq.s32.totalorder %s19, 1
      %p50 = por %p48, %p49
      %p51 = scmp.ne.s32.totalorder %s43, %s46
      %p52 = scmp.eq.s32.totalorder %s19, 0
      %p53 = por %p51, %p52
      %p54 = scmp.ne.s32.totalorder %s43, %s46
      %p55 = scmp.eq.s32.totalorder %s24, 1
      %p56 = por %p54, %p55
      %p57 = scmp.ne.s32.totalorder %s46, %s47
      %p58 = scmp.eq.s32.totalorder %s24, 0
      %p59 = por %p57, %p58
      %p60 = scmp.ne.s32.totalorder %s46, %s47
      %p61 = scmp.eq.s32.totalorder %s25, 1
      %p62 = por %p60, %p61
      %p64 = scmp.ne.s32.totalorder %s47, %s63
      %p65 = scmp.eq.s32.totalorder %s25, 0
      %p66 = por %p64, %p65
      %s67 = ssub.s32 %s27, %s34
      %p68 = scmp.eq.s32.totalorder %s67, 0
      %s70 = sadd.s32 %s69, 1
      %s71 = scalar_select %p68, %s69, %s70
      %p74 = pneg %p68
      %p75 = scmp.eq.s32.totalorder %s19, 1
      %p76 = por %p74, %p75
      %p77 = scmp.ne.s32.totalorder %s69, %s72
      %p78 = scmp.eq.s32.totalorder %s19, 0
      %p79 = por %p77, %p78
      %p80 = scmp.ne.s32.totalorder %s69, %s72
      %p81 = scmp.eq.s32.totalorder %s24, 1
      %p82 = por %p80, %p81
      %p83 = scmp.ne.s32.totalorder %s72, %s73
      %p84 = scmp.eq.s32.totalorder %s24, 0
      %p85 = por %p83, %p84
      %p86 = scmp.ne.s32.totalorder %s72, %s73
      %p87 = scmp.eq.s32.totalorder %s25, 1
      %p88 = por %p86, %p87
      %p90 = scmp.ne.s32.totalorder %s73, %s89
      %p91 = scmp.eq.s32.totalorder %s25, 0
      %p92 = por %p90, %p91
      %s94 = sadd.s32 %s93, 1
      %p97 = scmp.eq.s32.totalorder %s19, 1
      %p98 = scmp.ne.s32.totalorder %s93, %s95
      %p99 = scmp.eq.s32.totalorder %s19, 0
      %p100 = por %p98, %p99
      %p101 = scmp.ne.s32.totalorder %s93, %s95
      %p102 = scmp.eq.s32.totalorder %s24, 1
      %p103 = por %p101, %p102
      %p104 = scmp.ne.s32.totalorder %s95, %s96
      %p105 = scmp.eq.s32.totalorder %s24, 0
      %p106 = por %p104, %p105
      %p107 = scmp.ne.s32.totalorder %s95, %s96
      %p108 = scmp.eq.s32.totalorder %s25, 1
      %p109 = por %p107, %p108
      %p111 = scmp.ne.s32.totalorder %s96, %s110
      %p112 = scmp.eq.s32.totalorder %s25, 0
      %p113 = por %p111, %p112
      %s115 = sadd.s32 %s114, 1
      %p118 = scmp.eq.s32.totalorder %s19, 1
      %p119 = scmp.ne.s32.totalorder %s114, %s116
      %p120 = scmp.eq.s32.totalorder %s19, 0
      %p121 = por %p119, %p120
      %p122 = scmp.ne.s32.totalorder %s114, %s116
      %p123 = scmp.eq.s32.totalorder %s24, 1
      %p124 = por %p122, %p123
      %p125 = scmp.ne.s32.totalorder %s116, %s117
      %p126 = scmp.eq.s32.totalorder %s24, 0
      %p127 = por %p125, %p126
      %p128 = scmp.ne.s32.totalorder %s116, %s117
      %p129 = scmp.eq.s32.totalorder %s25, 1
      %p130 = por %p128, %p129
      %p132 = scmp.ne.s32.totalorder %s117, %s131
      %p133 = scmp.eq.s32.totalorder %s25, 0
      %p134 = por %p132, %p133
      %s136 = sadd.s32 %s135, 1
      %p139 = scmp.eq.s32.totalorder %s19, 1
      %p140 = scmp.ne.s32.totalorder %s135, %s137
      %p141 = scmp.eq.s32.totalorder %s19, 0
      %p142 = por %p140, %p141
      %p143 = scmp.ne.s32.totalorder %s135, %s137
      %p144 = scmp.eq.s32.totalorder %s24, 1
      %p145 = por %p143, %p144
      %p146 = scmp.ne.s32.totalorder %s137, %s138
      %p147 = scmp.eq.s32.totalorder %s24, 0
      %p148 = por %p146, %p147
      %p149 = scmp.ne.s32.totalorder %s137, %s138
      %p150 = scmp.eq.s32.totalorder %s25, 1
      %p151 = por %p149, %p150
      %p153 = scmp.ne.s32.totalorder %s138, %s152
      %p154 = scmp.eq.s32.totalorder %s25, 0
      %p155 = por %p153, %p154
      %s156 = ssub.s32 %s26, %s38
      %p157 = scmp.eq.s32.totalorder %s156, 0
      %s159 = sadd.s32 %s158, 1
      %s160 = scalar_select %p157, %s158, %s159
      %p163 = pneg %p157
      %p164 = scmp.eq.s32.totalorder %s19, 1
      %p165 = por %p163, %p164
      %p166 = scmp.ne.s32.totalorder %s158, %s161
      %p167 = scmp.eq.s32.totalorder %s19, 0
      %p168 = por %p166, %p167
      %p169 = scmp.ne.s32.totalorder %s158, %s161
      %p170 = scmp.eq.s32.totalorder %s24, 1
      %p171 = por %p169, %p170
      %p172 = scmp.ne.s32.totalorder %s161, %s162
      %p173 = scmp.eq.s32.totalorder %s24, 0
      %p174 = por %p172, %p173
      %p175 = scmp.ne.s32.totalorder %s161, %s162
      %p176 = scmp.eq.s32.totalorder %s25, 1
      %p177 = por %p175, %p176
      %p179 = scmp.ne.s32.totalorder %s162, %s178
      %p180 = scmp.eq.s32.totalorder %s25, 0
      %p181 = por %p179, %p180
      %p182 = scmp.le.s32.totalorder 1, %s19
      %p183 = scmp.lt.s32.totalorder %s19, 3
      %p184 = pnand %p182, %p183
      %p185 = pneg %p184
      // Predicated region
      $region9: #{tpu_custom_call.1} parent=5 // pred_check
        _
      $region10: #{tpu_custom_call.1} parent=5 // pred_check_branch
        %187 = sbr.rel (%p184) target = $region12
      $region11: #{tpu_custom_call.1} parent=5 // pred_region
        %s188 = ssub.s32 %s19, 1
        // Predicated region
        $region13: #{tpu_custom_call.1} parent=11 // pred_check
          %p189 = pneg %p85
        $region14: #{tpu_custom_call.1} parent=11 // pred_check_branch
          %191 = sbr.rel (%p189) target = $region16
        $region15: #{tpu_custom_call.1} parent=11 // pred_region
          %s192 = smul.u32 16, %s29
          %194 = vsyncadd [#allocation7], 0
          %s195 = smul.addr %s192, 6
          %s196 = smul.addr %s195, 8
          %s197 = scalar_lea.hbm %s1, %s196
          %s198 = sshll.u32 %s197, 4
          %s199 = int_to_ptr.hbm [resolvable:$true] %s198
          %s200 = sshll.u32 [#allocation6], 4
          %s201 = int_to_ptr.vmem [resolvable:$true] %s200
          %206 = dma.hbm_to_vmem [thread:$0]  %s199, 12288, %s201, [#allocation7], 768, 768, 48
        $region16: #{tpu_custom_call.1} parent=11 // pred_fallthru
          _
        // Predicated region
        $region17: #{tpu_custom_call.1} parent=11 // pred_check
          %p207 = pneg %p106
        $region18: #{tpu_custom_call.1} parent=11 // pred_check_branch
          %209 = sbr.rel (%p207) target = $region20
        $region19: #{tpu_custom_call.1} parent=11 // pred_region
          %211 = vsyncadd [#allocation7], 0
          %s213 = sshll.u32 %s2, 4
          %s214 = int_to_ptr.hbm [resolvable:$true] %s213
          %s215 = sshll.u32 [#allocation8], 4
          %s216 = int_to_ptr.vmem [resolvable:$true] %s215
          %218 = dma.hbm_to_vmem [thread:$0]  %s214, 32, %s216, [#allocation7]
        $region20: #{tpu_custom_call.1} parent=11 // pred_fallthru
          _
        // Predicated region
        $region21: #{tpu_custom_call.1} parent=11 // pred_check
          %p219 = pneg %p127
        $region22: #{tpu_custom_call.1} parent=11 // pred_check_branch
          %221 = sbr.rel (%p219) target = $region24
        $region23: #{tpu_custom_call.1} parent=11 // pred_region
          %223 = vsyncadd [#allocation10], 0
          %s224 = sshll.u32 %s3, 4
          %s225 = int_to_ptr.hbm [resolvable:$true] %s224
          %s226 = sshll.u32 [#allocation9], 4
          %s227 = int_to_ptr.vmem [resolvable:$true] %s226
          %232 = dma.hbm_to_vmem [thread:$0]  %s225, 3072, %s227, [#allocation10], 128, 128, 8
        $region24: #{tpu_custom_call.1} parent=11 // pred_fallthru
          _
        // Predicated region
        $region25: #{tpu_custom_call.1} parent=11 // pred_check
          %p233 = pneg %p148
        $region26: #{tpu_custom_call.1} parent=11 // pred_check_branch
          %235 = sbr.rel (%p233) target = $region28
        $region27: #{tpu_custom_call.1} parent=11 // pred_region
          _
        $region28: #{tpu_custom_call.1} parent=11 // pred_fallthru
          _
      $region12: #{tpu_custom_call.1} parent=5 // pred_fallthru
        _
      %p236 = scmp.lt.s32.totalorder %s19, 2
      // Predicated region
      $region29: #{tpu_custom_call.1} parent=5 // pred_check
        %p237 = pneg %p236
      $region30: #{tpu_custom_call.1} parent=5 // pred_check_branch
        %239 = sbr.rel (%p237) target = $region32
      $region31: #{tpu_custom_call.1} parent=5 // pred_region
        // Predicated region
        $region33: #{tpu_custom_call.1} parent=31 // pred_check
          %p240 = pneg %p53
        $region34: #{tpu_custom_call.1} parent=31 // pred_check_branch
          %242 = sbr.rel (%p240) target = $region36
        $region35: #{tpu_custom_call.1} parent=31 // pred_region
          %s243 = sand.u32 %s43, 1
          %s244 = scalar_lea.sflag [#allocation4], %s243
          %s245 = sand.u32 %s43, 1
          %s246 = smul.addr %s245, 152
          %s247 = scalar_lea.vmem [#allocation3], %s246
          %s248 = smul.u32 19, %s26
          %250 = vsyncadd %s244, 0
          %s251 = sadd.s32 %s27, %s248
          %s252 = smul.addr %s251, 8
          %s253 = scalar_lea.hbm %s0, %s252
          %s254 = sshll.u32 %s253, 4
          %s255 = int_to_ptr.hbm [resolvable:$true] %s254
          %s256 = sshll.u32 %s247, 4
          %s257 = int_to_ptr.vmem [resolvable:$true] %s256
          %262 = dma.hbm_to_vmem [thread:$0]  %s255, 2432, %s257, %s244, 128, 128, 8
        $region36: #{tpu_custom_call.1} parent=31 // pred_fallthru
          _
      $region32: #{tpu_custom_call.1} parent=5 // pred_fallthru
        _
      %p263 = scmp.le.s32.totalorder 1, %s19
      %p264 = scmp.lt.s32.totalorder %s19, 3
      %p265 = pnand %p263, %p264
      %p266 = pneg %p265
      // Predicated region
      $region37: #{tpu_custom_call.1} parent=5 // pred_check
        _
      $region38: #{tpu_custom_call.1} parent=5 // pred_check_branch
        %268 = sbr.rel (%p265) target = $region40
      $region39: #{tpu_custom_call.1} parent=5 // pred_region
        %s269 = ssub.s32 %s19, 1
        %s270 = sand.u32 %s46, 1
        %s271 = scalar_lea.sflag [#allocation4], %s270
        %s272 = sand.u32 %s46, 1
        %s273 = smul.addr %s272, 152
        %s274 = scalar_lea.vmem [#allocation3], %s273
        // Predicated region
        $region41: #{tpu_custom_call.1} parent=39 // pred_check
          %p275 = pneg %p59
        $region42: #{tpu_custom_call.1} parent=39 // pred_check_branch
          %277 = sbr.rel (%p275) target = $region44
        $region43: #{tpu_custom_call.1} parent=39 // pred_region
          %279 = dma.done %s271, 2432
        $region44: #{tpu_custom_call.1} parent=39 // pred_fallthru
          _
        // Predicated region
        $region45: #{tpu_custom_call.1} parent=39 // pred_check
          %p280 = pneg %p85
        $region46: #{tpu_custom_call.1} parent=39 // pred_check_branch
          %282 = sbr.rel (%p280) target = $region48
        $region47: #{tpu_custom_call.1} parent=39 // pred_region
          %284 = dma.done [#allocation7], 12288
        $region48: #{tpu_custom_call.1} parent=39 // pred_fallthru
          _
        // Predicated region
        $region49: #{tpu_custom_call.1} parent=39 // pred_check
          %p285 = pneg %p106
        $region50: #{tpu_custom_call.1} parent=39 // pred_check_branch
          %287 = sbr.rel (%p285) target = $region52
        $region51: #{tpu_custom_call.1} parent=39 // pred_region
          %289 = dma.done [#allocation7], 32
        $region52: #{tpu_custom_call.1} parent=39 // pred_fallthru
          _
        // Predicated region
        $region53: #{tpu_custom_call.1} parent=39 // pred_check
          %p290 = pneg %p127
        $region54: #{tpu_custom_call.1} parent=39 // pred_check_branch
          %292 = sbr.rel (%p290) target = $region56
        $region55: #{tpu_custom_call.1} parent=39 // pred_region
          %294 = dma.done [#allocation10], 3072
        $region56: #{tpu_custom_call.1} parent=39 // pred_fallthru
          _
        %s295 = sand.u32 %s46, 1
        %s296 = scalar_lea.sflag [#allocation4], %s295
        %s297 = sand.u32 %s46, 1
        %s298 = smul.addr %s297, 152
        %s299 = scalar_lea.vmem [#allocation3], %s298
        %p300 = pneg %p59
        %p301 = pneg %p56
        %p302 = pneg %p85
        %p303 = pneg %p82
        %p304 = pneg %p106
        %p305 = pneg %p103
        %p306 = pneg %p127
        %p307 = pneg %p124
        %p308 = pneg %p148
        %p309 = pneg %p145
        %p310 = pneg %p174
        %p311 = pneg %p171
        %s312 = sand.u32 %s161, 1
        %s313 = scalar_lea.sflag [#allocation5], %s312
        %s314 = sand.u32 %s161, 1
        %s315 = smul.addr %s314, 8
        %s316 = scalar_lea.vmem [#allocation11], %s315
        %s317 = smul.u32 19, %s28
        %s318 = smul.u32 16, %s29
        %v319 = vld [vmem:[%s274] sm:$0xff]
        %v320 = vld [vmem:[%s274 + $0x8] sm:$0xff]
        %v321 = vld [vmem:[%s274 + $0x10] sm:$0xff]
        %v322 = vld [vmem:[%s274 + $0x18] sm:$0xff]
        %v323 = vld [vmem:[%s274 + $0x20] sm:$0xff]
        %v324 = vld [vmem:[%s274 + $0x28] sm:$0xff]
        %v325 = vld [vmem:[%s274 + $0x30] sm:$0xff]
        %v326 = vld [vmem:[%s274 + $0x38] sm:$0xff]
        %v327 = vld [vmem:[%s274 + $0x40] sm:$0xff]
        %v328 = vld [vmem:[%s274 + $0x48] sm:$0xff]
        %v329 = vld [vmem:[%s274 + $0x50] sm:$0xff]
        %v330 = vld [vmem:[%s274 + $0x58] sm:$0xff]
        %v331 = vld [vmem:[%s274 + $0x60] sm:$0xff]
        %v332 = vld [vmem:[%s274 + $0x68] sm:$0xff]
        %v333 = vld [vmem:[%s274 + $0x70] sm:$0xff]
        %v334 = vld [vmem:[%s274 + $0x78] sm:$0xff]
        %v335 = vld [vmem:[%s274 + $0x80] sm:$0xff]
        %v336 = vld [vmem:[%s274 + $0x88] sm:$0xff]
        %v337 = vld [vmem:[%s274 + $0x90] sm:$0xff]
        %v338 = vld [vmem:[#allocation6] sm:$0xff]
        %v339 = vld [vmem:[#allocation6 + $0x8] sm:$0xff]
        %v340 = vld [vmem:[#allocation6 + $0x10] sm:$0xff]
        %v341 = vld [vmem:[#allocation6 + $0x18] sm:$0xff]
        %v342 = vld [vmem:[#allocation6 + $0x20] sm:$0xff]
        %v343 = vld [vmem:[#allocation6 + $0x28] sm:$0xff]
        %v344 = vld [vmem:[#allocation6 + $0x30] sm:$0xff]
        %v345 = vld [vmem:[#allocation6 + $0x38] sm:$0xff]
        %v346 = vld [vmem:[#allocation6 + $0x40] sm:$0xff]
        %v347 = vld [vmem:[#allocation6 + $0x48] sm:$0xff]
        %v348 = vld [vmem:[#allocation6 + $0x50] sm:$0xff]
        %v349 = vld [vmem:[#allocation6 + $0x58] sm:$0xff]
        %v350 = vld [vmem:[#allocation6 + $0x60] sm:$0xff]
        %v351 = vld [vmem:[#allocation6 + $0x68] sm:$0xff]
        %v352 = vld [vmem:[#allocation6 + $0x70] sm:$0xff]
        %v353 = vld [vmem:[#allocation6 + $0x78] sm:$0xff]
        %v354 = vld [vmem:[#allocation6 + $0x80] sm:$0xff]
        %v355 = vld [vmem:[#allocation6 + $0x88] sm:$0xff]
        %v356 = vld [vmem:[#allocation6 + $0x90] sm:$0xff]
        %v357 = vld [vmem:[#allocation6 + $0x98] sm:$0xff]
        %v358 = vld [vmem:[#allocation6 + $0xa0] sm:$0xff]
        %v359 = vld [vmem:[#allocation6 + $0xa8] sm:$0xff]
        %v360 = vld [vmem:[#allocation6 + $0xb0] sm:$0xff]
        %v361 = vld [vmem:[#allocation6 + $0xb8] sm:$0xff]
        %v362 = vld [vmem:[#allocation6 + $0xc0] sm:$0xff]
        %v363 = vld [vmem:[#allocation6 + $0xc8] sm:$0xff]
        %v364 = vld [vmem:[#allocation6 + $0xd0] sm:$0xff]
        %v365 = vld [vmem:[#allocation6 + $0xd8] sm:$0xff]
        %v366 = vld [vmem:[#allocation6 + $0xe0] sm:$0xff]
        %v367 = vld [vmem:[#allocation6 + $0xe8] sm:$0xff]
        %v368 = vld [vmem:[#allocation6 + $0xf0] sm:$0xff]
        %v369 = vld [vmem:[#allocation6 + $0xf8] sm:$0xff]
        %v370 = vld [vmem:[#allocation6 + $0x100] sm:$0xff]
        %v371 = vld [vmem:[#allocation6 + $0x108] sm:$0xff]
        %v372 = vld [vmem:[#allocation6 + $0x110] sm:$0xff]
        %v373 = vld [vmem:[#allocation6 + $0x118] sm:$0xff]
        %v374 = vld [vmem:[#allocation6 + $0x120] sm:$0xff]
        %v375 = vld [vmem:[#allocation6 + $0x128] sm:$0xff]
        %v376 = vld [vmem:[#allocation6 + $0x130] sm:$0xff]
        %v377 = vld [vmem:[#allocation6 + $0x138] sm:$0xff]
        %v378 = vld [vmem:[#allocation6 + $0x140] sm:$0xff]
        %v379 = vld [vmem:[#allocation6 + $0x148] sm:$0xff]
        %v380 = vld [vmem:[#allocation6 + $0x150] sm:$0xff]
        %v381 = vld [vmem:[#allocation6 + $0x158] sm:$0xff]
        %v382 = vld [vmem:[#allocation6 + $0x160] sm:$0xff]
        %v383 = vld [vmem:[#allocation6 + $0x168] sm:$0xff]
        %v384 = vld [vmem:[#allocation6 + $0x170] sm:$0xff]
        %v385 = vld [vmem:[#allocation6 + $0x178] sm:$0xff]
        %v386 = vld [vmem:[#allocation6 + $0x180] sm:$0xff]
        %v387 = vld [vmem:[#allocation6 + $0x188] sm:$0xff]
        %v388 = vld [vmem:[#allocation6 + $0x190] sm:$0xff]
        %v389 = vld [vmem:[#allocation6 + $0x198] sm:$0xff]
        %v390 = vld [vmem:[#allocation6 + $0x1a0] sm:$0xff]
        %v391 = vld [vmem:[#allocation6 + $0x1a8] sm:$0xff]
        %v392 = vld [vmem:[#allocation6 + $0x1b0] sm:$0xff]
        %v393 = vld [vmem:[#allocation6 + $0x1b8] sm:$0xff]
        %v394 = vld [vmem:[#allocation6 + $0x1c0] sm:$0xff]
        %v395 = vld [vmem:[#allocation6 + $0x1c8] sm:$0xff]
        %v396 = vld [vmem:[#allocation6 + $0x1d0] sm:$0xff]
        %v397 = vld [vmem:[#allocation6 + $0x1d8] sm:$0xff]
        %v398 = vld [vmem:[#allocation6 + $0x1e0] sm:$0xff]
        %v399 = vld [vmem:[#allocation6 + $0x1e8] sm:$0xff]
        %v400 = vld [vmem:[#allocation6 + $0x1f0] sm:$0xff]
        %v401 = vld [vmem:[#allocation6 + $0x1f8] sm:$0xff]
        %v402 = vld [vmem:[#allocation6 + $0x200] sm:$0xff]
        %v403 = vld [vmem:[#allocation6 + $0x208] sm:$0xff]
        %v404 = vld [vmem:[#allocation6 + $0x210] sm:$0xff]
        %v405 = vld [vmem:[#allocation6 + $0x218] sm:$0xff]
        %v406 = vld [vmem:[#allocation6 + $0x220] sm:$0xff]
        %v407 = vld [vmem:[#allocation6 + $0x228] sm:$0xff]
        %v408 = vld [vmem:[#allocation6 + $0x230] sm:$0xff]
        %v409 = vld [vmem:[#allocation6 + $0x238] sm:$0xff]
        %v410 = vld [vmem:[#allocation6 + $0x240] sm:$0xff]
        %v411 = vld [vmem:[#allocation6 + $0x248] sm:$0xff]
        %v412 = vld [vmem:[#allocation6 + $0x250] sm:$0xff]
        %v413 = vld [vmem:[#allocation6 + $0x258] sm:$0xff]
        %v414 = vld [vmem:[#allocation6 + $0x260] sm:$0xff]
        %v415 = vld [vmem:[#allocation6 + $0x268] sm:$0xff]
        %v416 = vld [vmem:[#allocation6 + $0x270] sm:$0xff]
        %v417 = vld [vmem:[#allocation6 + $0x278] sm:$0xff]
        %v418 = vld [vmem:[#allocation6 + $0x280] sm:$0xff]
        %v419 = vld [vmem:[#allocation6 + $0x288] sm:$0xff]
        %v420 = vld [vmem:[#allocation6 + $0x290] sm:$0xff]
        %v421 = vld [vmem:[#allocation6 + $0x298] sm:$0xff]
        %v422 = vld [vmem:[#allocation6 + $0x2a0] sm:$0xff]
        %v423 = vld [vmem:[#allocation6 + $0x2a8] sm:$0xff]
        %v424 = vld [vmem:[#allocation6 + $0x2b0] sm:$0xff]
        %v425 = vld [vmem:[#allocation6 + $0x2b8] sm:$0xff]
        %v426 = vld [vmem:[#allocation6 + $0x2c0] sm:$0xff]
        %v427 = vld [vmem:[#allocation6 + $0x2c8] sm:$0xff]
        %v428 = vld [vmem:[#allocation6 + $0x2d0] sm:$0xff]
        %v429 = vld [vmem:[#allocation6 + $0x2d8] sm:$0xff]
        %v430 = vld [vmem:[#allocation6 + $0x2e0] sm:$0xff]
        %v431 = vld [vmem:[#allocation6 + $0x2e8] sm:$0xff]
        %v432 = vld [vmem:[#allocation6 + $0x2f0] sm:$0xff]
        %v433 = vld [vmem:[#allocation6 + $0x2f8] sm:$0xff]
        %434 = vmatpush.msra.mxu0 %v428
        %435 = vmatpush.msra.mxu0 %v422
        %436 = vmatpush.msra.mxu0 %v416
        %437 = vmatpush.msra.mxu0 %v410
        %438 = vmatpush.msra.mxu0 %v404
        %439 = vmatpush.msra.mxu0 %v398
        %440 = vmatpush.msra.mxu0 %v392
        %441 = vmatpush.msra.mxu0 %v386
        %442 = vmatpush.msra.mxu0 %v380
        %443 = vmatpush.msra.mxu0 %v374
        %444 = vmatpush.msra.mxu0 %v368
        %445 = vmatpush.msra.mxu0 %v362
        %446 = vmatpush.msra.mxu0 %v356
        %447 = vmatpush.msra.mxu0 %v350
        %448 = vmatpush.msra.mxu0 %v344
        %449 = vmatpush.msra.mxu0 %v338
        %450 = vmatmul.f32.gmra.mxu0 %v319
        %v451 = vpop.f32.mrf.mxu0
        %v452 = vadd.f32 0.0, %v451
        %453 = vmatmul.f32.gmra.mxu0 %v320
        %v454 = vpop.f32.mrf.mxu0
        %v455 = vadd.f32 0.0, %v454
        %456 = vmatmul.f32.gmra.mxu0 %v321
        %v457 = vpop.f32.mrf.mxu0
        %v458 = vadd.f32 0.0, %v457
        %459 = vmatmul.f32.gmra.mxu0 %v322
        %v460 = vpop.f32.mrf.mxu0
        %v461 = vadd.f32 0.0, %v460
        %462 = vmatmul.f32.gmra.mxu0 %v323
        %v463 = vpop.f32.mrf.mxu0
        %v464 = vadd.f32 0.0, %v463
        %465 = vmatmul.f32.gmra.mxu0 %v324
        %v466 = vpop.f32.mrf.mxu0
        %v467 = vadd.f32 0.0, %v466
        %468 = vmatmul.f32.gmra.mxu0 %v325
        %v469 = vpop.f32.mrf.mxu0
        %v470 = vadd.f32 0.0, %v469
        %471 = vmatmul.f32.gmra.mxu0 %v326
        %v472 = vpop.f32.mrf.mxu0
        %v473 = vadd.f32 0.0, %v472
        %474 = vmatmul.f32.gmra.mxu0 %v327
        %v475 = vpop.f32.mrf.mxu0
        %v476 = vadd.f32 0.0, %v475
        %477 = vmatmul.f32.gmra.mxu0 %v328
        %v478 = vpop.f32.mrf.mxu0
        %v479 = vadd.f32 0.0, %v478
        %480 = vmatmul.f32.gmra.mxu0 %v329
        %v481 = vpop.f32.mrf.mxu0
        %v482 = vadd.f32 0.0, %v481
        %483 = vmatmul.f32.gmra.mxu0 %v330
        %v484 = vpop.f32.mrf.mxu0
        %v485 = vadd.f32 0.0, %v484
        %486 = vmatmul.f32.gmra.mxu0 %v331
        %v487 = vpop.f32.mrf.mxu0
        %v488 = vadd.f32 0.0, %v487
        %489 = vmatmul.f32.gmra.mxu0 %v332
        %v490 = vpop.f32.mrf.mxu0
        %v491 = vadd.f32 0.0, %v490
        %492 = vmatmul.f32.gmra.mxu0 %v333
        %v493 = vpop.f32.mrf.mxu0
        %v494 = vadd.f32 0.0, %v493
        %495 = vmatmul.f32.gmra.mxu0 %v334
        %v496 = vpop.f32.mrf.mxu0
        %v497 = vadd.f32 0.0, %v496
        %498 = vmatmul.f32.gmra.mxu0 %v335
        %v499 = vpop.f32.mrf.mxu0
        %v500 = vadd.f32 0.0, %v499
        %501 = vmatmul.f32.gmra.mxu0 %v336
        %v502 = vpop.f32.mrf.mxu0
        %v503 = vadd.f32 0.0, %v502
        %504 = vmatmul.f32.gmra.mxu0 %v337
        %v505 = vpop.f32.mrf.mxu0
        %v506 = vadd.f32 0.0, %v505
        %507 = vdwg.mxu0
        %508 = vmatpush.msra.mxu0 %v429
        %509 = vmatpush.msra.mxu0 %v423
        %510 = vmatpush.msra.mxu0 %v417
        %511 = vmatpush.msra.mxu0 %v411
        %512 = vmatpush.msra.mxu0 %v405
        %513 = vmatpush.msra.mxu0 %v399
        %514 = vmatpush.msra.mxu0 %v393
        %515 = vmatpush.msra.mxu0 %v387
        %516 = vmatpush.msra.mxu0 %v381
        %517 = vmatpush.msra.mxu0 %v375
        %518 = vmatpush.msra.mxu0 %v369
        %519 = vmatpush.msra.mxu0 %v363
        %520 = vmatpush.msra.mxu0 %v357
        %521 = vmatpush.msra.mxu0 %v351
        %522 = vmatpush.msra.mxu0 %v345
        %523 = vmatpush.msra.mxu0 %v339
        %524 = vmatmul.f32.gmra.mxu0 %v319
        %v525 = vpop.f32.mrf.mxu0
        %v526 = vadd.f32 0.0, %v525
        %527 = vmatmul.f32.gmra.mxu0 %v320
        %v528 = vpop.f32.mrf.mxu0
        %v529 = vadd.f32 0.0, %v528
        %530 = vmatmul.f32.gmra.mxu0 %v321
        %v531 = vpop.f32.mrf.mxu0
        %v532 = vadd.f32 0.0, %v531
        %533 = vmatmul.f32.gmra.mxu0 %v322
        %v534 = vpop.f32.mrf.mxu0
        %v535 = vadd.f32 0.0, %v534
        %536 = vmatmul.f32.gmra.mxu0 %v323
        %v537 = vpop.f32.mrf.mxu0
        %v538 = vadd.f32 0.0, %v537
        %539 = vmatmul.f32.gmra.mxu0 %v324
        %v540 = vpop.f32.mrf.mxu0
        %v541 = vadd.f32 0.0, %v540
        %542 = vmatmul.f32.gmra.mxu0 %v325
        %v543 = vpop.f32.mrf.mxu0
        %v544 = vadd.f32 0.0, %v543
        %545 = vmatmul.f32.gmra.mxu0 %v326
        %v546 = vpop.f32.mrf.mxu0
        %v547 = vadd.f32 0.0, %v546
        %548 = vmatmul.f32.gmra.mxu0 %v327
        %v549 = vpop.f32.mrf.mxu0
        %v550 = vadd.f32 0.0, %v549
        %551 = vmatmul.f32.gmra.mxu0 %v328
        %v552 = vpop.f32.mrf.mxu0
        %v553 = vadd.f32 0.0, %v552
        %554 = vmatmul.f32.gmra.mxu0 %v329
        %v555 = vpop.f32.mrf.mxu0
        %v556 = vadd.f32 0.0, %v555
        %557 = vmatmul.f32.gmra.mxu0 %v330
        %v558 = vpop.f32.mrf.mxu0
        %v559 = vadd.f32 0.0, %v558
        %560 = vmatmul.f32.gmra.mxu0 %v331
        %v561 = vpop.f32.mrf.mxu0
        %v562 = vadd.f32 0.0, %v561
        %563 = vmatmul.f32.gmra.mxu0 %v332
        %v564 = vpop.f32.mrf.mxu0
        %v565 = vadd.f32 0.0, %v564
        %566 = vmatmul.f32.gmra.mxu0 %v333
        %v567 = vpop.f32.mrf.mxu0
        %v568 = vadd.f32 0.0, %v567
        %569 = vmatmul.f32.gmra.mxu0 %v334
        %v570 = vpop.f32.mrf.mxu0
        %v571 = vadd.f32 0.0, %v570
        %572 = vmatmul.f32.gmra.mxu0 %v335
        %v573 = vpop.f32.mrf.mxu0
        %v574 = vadd.f32 0.0, %v573
        %575 = vmatmul.f32.gmra.mxu0 %v336
        %v576 = vpop.f32.mrf.mxu0
        %v577 = vadd.f32 0.0, %v576
        %578 = vmatmul.f32.gmra.mxu0 %v337
        %v579 = vpop.f32.mrf.mxu0
        %v580 = vadd.f32 0.0, %v579
        %581 = vdwg.mxu0
        %582 = vmatpush.msra.mxu0 %v430
        %583 = vmatpush.msra.mxu0 %v424
        %584 = vmatpush.msra.mxu0 %v418
        %585 = vmatpush.msra.mxu0 %v412
        %586 = vmatpush.msra.mxu0 %v406
        %587 = vmatpush.msra.mxu0 %v400
        %588 = vmatpush.msra.mxu0 %v394
        %589 = vmatpush.msra.mxu0 %v388
        %590 = vmatpush.msra.mxu0 %v382
        %591 = vmatpush.msra.mxu0 %v376
        %592 = vmatpush.msra.mxu0 %v370
        %593 = vmatpush.msra.mxu0 %v364
        %594 = vmatpush.msra.mxu0 %v358
        %595 = vmatpush.msra.mxu0 %v352
        %596 = vmatpush.msra.mxu0 %v346
        %597 = vmatpush.msra.mxu0 %v340
        %598 = vmatmul.f32.gmra.mxu0 %v319
        %v599 = vpop.f32.mrf.mxu0
        %v600 = vadd.f32 0.0, %v599
        %601 = vmatmul.f32.gmra.mxu0 %v320
        %v602 = vpop.f32.mrf.mxu0
        %v603 = vadd.f32 0.0, %v602
        %604 = vmatmul.f32.gmra.mxu0 %v321
        %v605 = vpop.f32.mrf.mxu0
        %v606 = vadd.f32 0.0, %v605
        %607 = vmatmul.f32.gmra.mxu0 %v322
        %v608 = vpop.f32.mrf.mxu0
        %v609 = vadd.f32 0.0, %v608
        %610 = vmatmul.f32.gmra.mxu0 %v323
        %v611 = vpop.f32.mrf.mxu0
        %v612 = vadd.f32 0.0, %v611
        %613 = vmatmul.f32.gmra.mxu0 %v324
        %v614 = vpop.f32.mrf.mxu0
        %v615 = vadd.f32 0.0, %v614
        %616 = vmatmul.f32.gmra.mxu0 %v325
        %v617 = vpop.f32.mrf.mxu0
        %v618 = vadd.f32 0.0, %v617
        %619 = vmatmul.f32.gmra.mxu0 %v326
        %v620 = vpop.f32.mrf.mxu0
        %v621 = vadd.f32 0.0, %v620
        %622 = vmatmul.f32.gmra.mxu0 %v327
        %v623 = vpop.f32.mrf.mxu0
        %v624 = vadd.f32 0.0, %v623
        %625 = vmatmul.f32.gmra.mxu0 %v328
        %v626 = vpop.f32.mrf.mxu0
        %v627 = vadd.f32 0.0, %v626
        %628 = vmatmul.f32.gmra.mxu0 %v329
        %v629 = vpop.f32.mrf.mxu0
        %v630 = vadd.f32 0.0, %v629
        %631 = vmatmul.f32.gmra.mxu0 %v330
        %v632 = vpop.f32.mrf.mxu0
        %v633 = vadd.f32 0.0, %v632
        %634 = vmatmul.f32.gmra.mxu0 %v331
        %v635 = vpop.f32.mrf.mxu0
        %v636 = vadd.f32 0.0, %v635
        %637 = vmatmul.f32.gmra.mxu0 %v332
        %v638 = vpop.f32.mrf.mxu0
        %v639 = vadd.f32 0.0, %v638
        %640 = vmatmul.f32.gmra.mxu0 %v333
        %v641 = vpop.f32.mrf.mxu0
        %v642 = vadd.f32 0.0, %v641
        %643 = vmatmul.f32.gmra.mxu0 %v334
        %v644 = vpop.f32.mrf.mxu0
        %v645 = vadd.f32 0.0, %v644
        %646 = vmatmul.f32.gmra.mxu0 %v335
        %v647 = vpop.f32.mrf.mxu0
        %v648 = vadd.f32 0.0, %v647
        %649 = vmatmul.f32.gmra.mxu0 %v336
        %v650 = vpop.f32.mrf.mxu0
        %v651 = vadd.f32 0.0, %v650
        %652 = vmatmul.f32.gmra.mxu0 %v337
        %v653 = vpop.f32.mrf.mxu0
        %v654 = vadd.f32 0.0, %v653
        %655 = vdwg.mxu0
        %656 = vmatpush.msra.mxu0 %v431
        %657 = vmatpush.msra.mxu0 %v425
        %658 = vmatpush.msra.mxu0 %v419
        %659 = vmatpush.msra.mxu0 %v413
        %660 = vmatpush.msra.mxu0 %v407
        %661 = vmatpush.msra.mxu0 %v401
        %662 = vmatpush.msra.mxu0 %v395
        %663 = vmatpush.msra.mxu0 %v389
        %664 = vmatpush.msra.mxu0 %v383
        %665 = vmatpush.msra.mxu0 %v377
        %666 = vmatpush.msra.mxu0 %v371
        %667 = vmatpush.msra.mxu0 %v365
        %668 = vmatpush.msra.mxu0 %v359
        %669 = vmatpush.msra.mxu0 %v353
        %670 = vmatpush.msra.mxu0 %v347
        %671 = vmatpush.msra.mxu0 %v341
        %672 = vmatmul.f32.gmra.mxu0 %v319
        %v673 = vpop.f32.mrf.mxu0
        %v674 = vadd.f32 0.0, %v673
        %675 = vmatmul.f32.gmra.mxu0 %v320
        %v676 = vpop.f32.mrf.mxu0
        %v677 = vadd.f32 0.0, %v676
        %678 = vmatmul.f32.gmra.mxu0 %v321
        %v679 = vpop.f32.mrf.mxu0
        %v680 = vadd.f32 0.0, %v679
        %681 = vmatmul.f32.gmra.mxu0 %v322
        %v682 = vpop.f32.mrf.mxu0
        %v683 = vadd.f32 0.0, %v682
        %684 = vmatmul.f32.gmra.mxu0 %v323
        %v685 = vpop.f32.mrf.mxu0
        %v686 = vadd.f32 0.0, %v685
        %687 = vmatmul.f32.gmra.mxu0 %v324
        %v688 = vpop.f32.mrf.mxu0
        %v689 = vadd.f32 0.0, %v688
        %690 = vmatmul.f32.gmra.mxu0 %v325
        %v691 = vpop.f32.mrf.mxu0
        %v692 = vadd.f32 0.0, %v691
        %693 = vmatmul.f32.gmra.mxu0 %v326
        %v694 = vpop.f32.mrf.mxu0
        %v695 = vadd.f32 0.0, %v694
        %696 = vmatmul.f32.gmra.mxu0 %v327
        %v697 = vpop.f32.mrf.mxu0
        %v698 = vadd.f32 0.0, %v697
        %699 = vmatmul.f32.gmra.mxu0 %v328
        %v700 = vpop.f32.mrf.mxu0
        %v701 = vadd.f32 0.0, %v700
        %702 = vmatmul.f32.gmra.mxu0 %v329
        %v703 = vpop.f32.mrf.mxu0
        %v704 = vadd.f32 0.0, %v703
        %705 = vmatmul.f32.gmra.mxu0 %v330
        %v706 = vpop.f32.mrf.mxu0
        %v707 = vadd.f32 0.0, %v706
        %708 = vmatmul.f32.gmra.mxu0 %v331
        %v709 = vpop.f32.mrf.mxu0
        %v710 = vadd.f32 0.0, %v709
        %711 = vmatmul.f32.gmra.mxu0 %v332
        %v712 = vpop.f32.mrf.mxu0
        %v713 = vadd.f32 0.0, %v712
        %714 = vmatmul.f32.gmra.mxu0 %v333
        %v715 = vpop.f32.mrf.mxu0
        %v716 = vadd.f32 0.0, %v715
        %717 = vmatmul.f32.gmra.mxu0 %v334
        %v718 = vpop.f32.mrf.mxu0
        %v719 = vadd.f32 0.0, %v718
        %720 = vmatmul.f32.gmra.mxu0 %v335
        %v721 = vpop.f32.mrf.mxu0
        %v722 = vadd.f32 0.0, %v721
        %723 = vmatmul.f32.gmra.mxu0 %v336
        %v724 = vpop.f32.mrf.mxu0
        %v725 = vadd.f32 0.0, %v724
        %726 = vmatmul.f32.gmra.mxu0 %v337
        %v727 = vpop.f32.mrf.mxu0
        %v728 = vadd.f32 0.0, %v727
        %729 = vdwg.mxu0
        %730 = vmatpush.msra.mxu0 %v432
        %731 = vmatpush.msra.mxu0 %v426
        %732 = vmatpush.msra.mxu0 %v420
        %733 = vmatpush.msra.mxu0 %v414
        %734 = vmatpush.msra.mxu0 %v408
        %735 = vmatpush.msra.mxu0 %v402
        %736 = vmatpush.msra.mxu0 %v396
        %737 = vmatpush.msra.mxu0 %v390
        %738 = vmatpush.msra.mxu0 %v384
        %739 = vmatpush.msra.mxu0 %v378
        %740 = vmatpush.msra.mxu0 %v372
        %741 = vmatpush.msra.mxu0 %v366
        %742 = vmatpush.msra.mxu0 %v360
        %743 = vmatpush.msra.mxu0 %v354
        %744 = vmatpush.msra.mxu0 %v348
        %745 = vmatpush.msra.mxu0 %v342
        %746 = vmatmul.f32.gmra.mxu0 %v319
        %v747 = vpop.f32.mrf.mxu0
        %v748 = vadd.f32 0.0, %v747
        %749 = vmatmul.f32.gmra.mxu0 %v320
        %v750 = vpop.f32.mrf.mxu0
        %v751 = vadd.f32 0.0, %v750
        %752 = vmatmul.f32.gmra.mxu0 %v321
        %v753 = vpop.f32.mrf.mxu0
        %v754 = vadd.f32 0.0, %v753
        %755 = vmatmul.f32.gmra.mxu0 %v322
        %v756 = vpop.f32.mrf.mxu0
        %v757 = vadd.f32 0.0, %v756
        %758 = vmatmul.f32.gmra.mxu0 %v323
        %v759 = vpop.f32.mrf.mxu0
        %v760 = vadd.f32 0.0, %v759
        %761 = vmatmul.f32.gmra.mxu0 %v324
        %v762 = vpop.f32.mrf.mxu0
        %v763 = vadd.f32 0.0, %v762
        %764 = vmatmul.f32.gmra.mxu0 %v325
        %v765 = vpop.f32.mrf.mxu0
        %v766 = vadd.f32 0.0, %v765
        %767 = vmatmul.f32.gmra.mxu0 %v326
        %v768 = vpop.f32.mrf.mxu0
        %v769 = vadd.f32 0.0, %v768
        %770 = vmatmul.f32.gmra.mxu0 %v327
        %v771 = vpop.f32.mrf.mxu0
        %v772 = vadd.f32 0.0, %v771
        %773 = vmatmul.f32.gmra.mxu0 %v328
        %v774 = vpop.f32.mrf.mxu0
        %v775 = vadd.f32 0.0, %v774
        %776 = vmatmul.f32.gmra.mxu0 %v329
        %v777 = vpop.f32.mrf.mxu0
        %v778 = vadd.f32 0.0, %v777
        %779 = vmatmul.f32.gmra.mxu0 %v330
        %v780 = vpop.f32.mrf.mxu0
        %v781 = vadd.f32 0.0, %v780
        %782 = vmatmul.f32.gmra.mxu0 %v331
        %v783 = vpop.f32.mrf.mxu0
        %v784 = vadd.f32 0.0, %v783
        %785 = vmatmul.f32.gmra.mxu0 %v332
        %v786 = vpop.f32.mrf.mxu0
        %v787 = vadd.f32 0.0, %v786
        %788 = vmatmul.f32.gmra.mxu0 %v333
        %v789 = vpop.f32.mrf.mxu0
        %v790 = vadd.f32 0.0, %v789
        %791 = vmatmul.f32.gmra.mxu0 %v334
        %v792 = vpop.f32.mrf.mxu0
        %v793 = vadd.f32 0.0, %v792
        %794 = vmatmul.f32.gmra.mxu0 %v335
        %v795 = vpop.f32.mrf.mxu0
        %v796 = vadd.f32 0.0, %v795
        %797 = vmatmul.f32.gmra.mxu0 %v336
        %v798 = vpop.f32.mrf.mxu0
        %v799 = vadd.f32 0.0, %v798
        %800 = vmatmul.f32.gmra.mxu0 %v337
        %v801 = vpop.f32.mrf.mxu0
        %v802 = vadd.f32 0.0, %v801
        %803 = vdwg.mxu0
        %804 = vmatpush.msra.mxu0 %v433
        %805 = vmatpush.msra.mxu0 %v427
        %806 = vmatpush.msra.mxu0 %v421
        %807 = vmatpush.msra.mxu0 %v415
        %808 = vmatpush.msra.mxu0 %v409
        %809 = vmatpush.msra.mxu0 %v403
        %810 = vmatpush.msra.mxu0 %v397
        %811 = vmatpush.msra.mxu0 %v391
        %812 = vmatpush.msra.mxu0 %v385
        %813 = vmatpush.msra.mxu0 %v379
        %814 = vmatpush.msra.mxu0 %v373
        %815 = vmatpush.msra.mxu0 %v367
        %816 = vmatpush.msra.mxu0 %v361
        %817 = vmatpush.msra.mxu0 %v355
        %818 = vmatpush.msra.mxu0 %v349
        %819 = vmatpush.msra.mxu0 %v343
        %820 = vmatmul.f32.gmra.mxu0 %v319
        %v821 = vpop.f32.mrf.mxu0
        %v822 = vadd.f32 0.0, %v821
        %823 = vmatmul.f32.gmra.mxu0 %v320
        %v824 = vpop.f32.mrf.mxu0
        %v825 = vadd.f32 0.0, %v824
        %826 = vmatmul.f32.gmra.mxu0 %v321
        %v827 = vpop.f32.mrf.mxu0
        %v828 = vadd.f32 0.0, %v827
        %829 = vmatmul.f32.gmra.mxu0 %v322
        %v830 = vpop.f32.mrf.mxu0
        %v831 = vadd.f32 0.0, %v830
        %832 = vmatmul.f32.gmra.mxu0 %v323
        %v833 = vpop.f32.mrf.mxu0
        %v834 = vadd.f32 0.0, %v833
        %835 = vmatmul.f32.gmra.mxu0 %v324
        %v836 = vpop.f32.mrf.mxu0
        %v837 = vadd.f32 0.0, %v836
        %838 = vmatmul.f32.gmra.mxu0 %v325
        %v839 = vpop.f32.mrf.mxu0
        %v840 = vadd.f32 0.0, %v839
        %841 = vmatmul.f32.gmra.mxu0 %v326
        %v842 = vpop.f32.mrf.mxu0
        %v843 = vadd.f32 0.0, %v842
        %844 = vmatmul.f32.gmra.mxu0 %v327
        %v845 = vpop.f32.mrf.mxu0
        %v846 = vadd.f32 0.0, %v845
        %847 = vmatmul.f32.gmra.mxu0 %v328
        %v848 = vpop.f32.mrf.mxu0
        %v849 = vadd.f32 0.0, %v848
        %850 = vmatmul.f32.gmra.mxu0 %v329
        %v851 = vpop.f32.mrf.mxu0
        %v852 = vadd.f32 0.0, %v851
        %853 = vmatmul.f32.gmra.mxu0 %v330
        %v854 = vpop.f32.mrf.mxu0
        %v855 = vadd.f32 0.0, %v854
        %856 = vmatmul.f32.gmra.mxu0 %v331
        %v857 = vpop.f32.mrf.mxu0
        %v858 = vadd.f32 0.0, %v857
        %859 = vmatmul.f32.gmra.mxu0 %v332
        %v860 = vpop.f32.mrf.mxu0
        %v861 = vadd.f32 0.0, %v860
        %862 = vmatmul.f32.gmra.mxu0 %v333
        %v863 = vpop.f32.mrf.mxu0
        %v864 = vadd.f32 0.0, %v863
        %865 = vmatmul.f32.gmra.mxu0 %v334
        %v866 = vpop.f32.mrf.mxu0
        %v867 = vadd.f32 0.0, %v866
        %868 = vmatmul.f32.gmra.mxu0 %v335
        %v869 = vpop.f32.mrf.mxu0
        %v870 = vadd.f32 0.0, %v869
        %871 = vmatmul.f32.gmra.mxu0 %v336
        %v872 = vpop.f32.mrf.mxu0
        %v873 = vadd.f32 0.0, %v872
        %874 = vmatmul.f32.gmra.mxu0 %v337
        %v875 = vpop.f32.mrf.mxu0
        %v876 = vadd.f32 0.0, %v875
        %877 = vdwg.mxu0
        %p878 = scmp.eq.s32.totalorder %s29, 0
        // Predicated region
        $region57: #{tpu_custom_call.1} parent=39 // pred_check
          %p879 = pneg %p878
        $region58: #{tpu_custom_call.1} parent=39 // pred_check_branch
          %881 = sbr.rel (%p879) target = $region60
        $region59: #{tpu_custom_call.1} parent=39 // pred_region
          %882 = vst [vmem:[#allocation2] sm:$0xff] %v452
          %883 = vst [vmem:[#allocation2 + $0x8] sm:$0xff] %v526
          %884 = vst [vmem:[#allocation2 + $0x10] sm:$0xff] %v600
          %885 = vst [vmem:[#allocation2 + $0x18] sm:$0xff] %v674
          %886 = vst [vmem:[#allocation2 + $0x20] sm:$0xff] %v748
          %887 = vst [vmem:[#allocation2 + $0x28] sm:$0xff] %v822
          %888 = vst [vmem:[#allocation2 + $0x30] sm:$0xff] %v455
          %889 = vst [vmem:[#allocation2 + $0x38] sm:$0xff] %v529
          %890 = vst [vmem:[#allocation2 + $0x40] sm:$0xff] %v603
          %891 = vst [vmem:[#allocation2 + $0x48] sm:$0xff] %v677
          %892 = vst [vmem:[#allocation2 + $0x50] sm:$0xff] %v751
          %893 = vst [vmem:[#allocation2 + $0x58] sm:$0xff] %v825
          %894 = vst [vmem:[#allocation2 + $0x60] sm:$0xff] %v458
          %895 = vst [vmem:[#allocation2 + $0x68] sm:$0xff] %v532
          %896 = vst [vmem:[#allocation2 + $0x70] sm:$0xff] %v606
          %897 = vst [vmem:[#allocation2 + $0x78] sm:$0xff] %v680
          %898 = vst [vmem:[#allocation2 + $0x80] sm:$0xff] %v754
          %899 = vst [vmem:[#allocation2 + $0x88] sm:$0xff] %v828
          %900 = vst [vmem:[#allocation2 + $0x90] sm:$0xff] %v461
          %901 = vst [vmem:[#allocation2 + $0x98] sm:$0xff] %v535
          %902 = vst [vmem:[#allocation2 + $0xa0] sm:$0xff] %v609
          %903 = vst [vmem:[#allocation2 + $0xa8] sm:$0xff] %v683
          %904 = vst [vmem:[#allocation2 + $0xb0] sm:$0xff] %v757
          %905 = vst [vmem:[#allocation2 + $0xb8] sm:$0xff] %v831
          %906 = vst [vmem:[#allocation2 + $0xc0] sm:$0xff] %v464
          %907 = vst [vmem:[#allocation2 + $0xc8] sm:$0xff] %v538
          %908 = vst [vmem:[#allocation2 + $0xd0] sm:$0xff] %v612
          %909 = vst [vmem:[#allocation2 + $0xd8] sm:$0xff] %v686
          %910 = vst [vmem:[#allocation2 + $0xe0] sm:$0xff] %v760
          %911 = vst [vmem:[#allocation2 + $0xe8] sm:$0xff] %v834
          %912 = vst [vmem:[#allocation2 + $0xf0] sm:$0xff] %v467
          %913 = vst [vmem:[#allocation2 + $0xf8] sm:$0xff] %v541
          %914 = vst [vmem:[#allocation2 + $0x100] sm:$0xff] %v615
          %915 = vst [vmem:[#allocation2 + $0x108] sm:$0xff] %v689
          %916 = vst [vmem:[#allocation2 + $0x110] sm:$0xff] %v763
          %917 = vst [vmem:[#allocation2 + $0x118] sm:$0xff] %v837
          %918 = vst [vmem:[#allocation2 + $0x120] sm:$0xff] %v470
          %919 = vst [vmem:[#allocation2 + $0x128] sm:$0xff] %v544
          %920 = vst [vmem:[#allocation2 + $0x130] sm:$0xff] %v618
          %921 = vst [vmem:[#allocation2 + $0x138] sm:$0xff] %v692
          %922 = vst [vmem:[#allocation2 + $0x140] sm:$0xff] %v766
          %923 = vst [vmem:[#allocation2 + $0x148] sm:$0xff] %v840
          %924 = vst [vmem:[#allocation2 + $0x150] sm:$0xff] %v473
          %925 = vst [vmem:[#allocation2 + $0x158] sm:$0xff] %v547
          %926 = vst [vmem:[#allocation2 + $0x160] sm:$0xff] %v621
          %927 = vst [vmem:[#allocation2 + $0x168] sm:$0xff] %v695
          %928 = vst [vmem:[#allocation2 + $0x170] sm:$0xff] %v769
          %929 = vst [vmem:[#allocation2 + $0x178] sm:$0xff] %v843
          %930 = vst [vmem:[#allocation2 + $0x180] sm:$0xff] %v476
          %931 = vst [vmem:[#allocation2 + $0x188] sm:$0xff] %v550
          %932 = vst [vmem:[#allocation2 + $0x190] sm:$0xff] %v624
          %933 = vst [vmem:[#allocation2 + $0x198] sm:$0xff] %v698
          %934 = vst [vmem:[#allocation2 + $0x1a0] sm:$0xff] %v772
          %935 = vst [vmem:[#allocation2 + $0x1a8] sm:$0xff] %v846
          %936 = vst [vmem:[#allocation2 + $0x1b0] sm:$0xff] %v479
          %937 = vst [vmem:[#allocation2 + $0x1b8] sm:$0xff] %v553
          %938 = vst [vmem:[#allocation2 + $0x1c0] sm:$0xff] %v627
          %939 = vst [vmem:[#allocation2 + $0x1c8] sm:$0xff] %v701
          %940 = vst [vmem:[#allocation2 + $0x1d0] sm:$0xff] %v775
          %941 = vst [vmem:[#allocation2 + $0x1d8] sm:$0xff] %v849
          %942 = vst [vmem:[#allocation2 + $0x1e0] sm:$0xff] %v482
          %943 = vst [vmem:[#allocation2 + $0x1e8] sm:$0xff] %v556
          %944 = vst [vmem:[#allocation2 + $0x1f0] sm:$0xff] %v630
          %945 = vst [vmem:[#allocation2 + $0x1f8] sm:$0xff] %v704
          %946 = vst [vmem:[#allocation2 + $0x200] sm:$0xff] %v778
          %947 = vst [vmem:[#allocation2 + $0x208] sm:$0xff] %v852
          %948 = vst [vmem:[#allocation2 + $0x210] sm:$0xff] %v485
          %949 = vst [vmem:[#allocation2 + $0x218] sm:$0xff] %v559
          %950 = vst [vmem:[#allocation2 + $0x220] sm:$0xff] %v633
          %951 = vst [vmem:[#allocation2 + $0x228] sm:$0xff] %v707
          %952 = vst [vmem:[#allocation2 + $0x230] sm:$0xff] %v781
          %953 = vst [vmem:[#allocation2 + $0x238] sm:$0xff] %v855
          %954 = vst [vmem:[#allocation2 + $0x240] sm:$0xff] %v488
          %955 = vst [vmem:[#allocation2 + $0x248] sm:$0xff] %v562
          %956 = vst [vmem:[#allocation2 + $0x250] sm:$0xff] %v636
          %957 = vst [vmem:[#allocation2 + $0x258] sm:$0xff] %v710
          %958 = vst [vmem:[#allocation2 + $0x260] sm:$0xff] %v784
          %959 = vst [vmem:[#allocation2 + $0x268] sm:$0xff] %v858
          %960 = vst [vmem:[#allocation2 + $0x270] sm:$0xff] %v491
          %961 = vst [vmem:[#allocation2 + $0x278] sm:$0xff] %v565
          %962 = vst [vmem:[#allocation2 + $0x280] sm:$0xff] %v639
          %963 = vst [vmem:[#allocation2 + $0x288] sm:$0xff] %v713
          %964 = vst [vmem:[#allocation2 + $0x290] sm:$0xff] %v787
          %965 = vst [vmem:[#allocation2 + $0x298] sm:$0xff] %v861
          %966 = vst [vmem:[#allocation2 + $0x2a0] sm:$0xff] %v494
          %967 = vst [vmem:[#allocation2 + $0x2a8] sm:$0xff] %v568
          %968 = vst [vmem:[#allocation2 + $0x2b0] sm:$0xff] %v642
          %969 = vst [vmem:[#allocation2 + $0x2b8] sm:$0xff] %v716
          %970 = vst [vmem:[#allocation2 + $0x2c0] sm:$0xff] %v790
          %971 = vst [vmem:[#allocation2 + $0x2c8] sm:$0xff] %v864
          %972 = vst [vmem:[#allocation2 + $0x2d0] sm:$0xff] %v497
          %973 = vst [vmem:[#allocation2 + $0x2d8] sm:$0xff] %v571
          %974 = vst [vmem:[#allocation2 + $0x2e0] sm:$0xff] %v645
          %975 = vst [vmem:[#allocation2 + $0x2e8] sm:$0xff] %v719
          %976 = vst [vmem:[#allocation2 + $0x2f0] sm:$0xff] %v793
          %977 = vst [vmem:[#allocation2 + $0x2f8] sm:$0xff] %v867
          %978 = vst [vmem:[#allocation2 + $0x300] sm:$0xff] %v500
          %979 = vst [vmem:[#allocation2 + $0x308] sm:$0xff] %v574
          %980 = vst [vmem:[#allocation2 + $0x310] sm:$0xff] %v648
          %981 = vst [vmem:[#allocation2 + $0x318] sm:$0xff] %v722
          %982 = vst [vmem:[#allocation2 + $0x320] sm:$0xff] %v796
          %983 = vst [vmem:[#allocation2 + $0x328] sm:$0xff] %v870
          %984 = vst [vmem:[#allocation2 + $0x330] sm:$0xff] %v503
          %985 = vst [vmem:[#allocation2 + $0x338] sm:$0xff] %v577
          %986 = vst [vmem:[#allocation2 + $0x340] sm:$0xff] %v651
          %987 = vst [vmem:[#allocation2 + $0x348] sm:$0xff] %v725
          %988 = vst [vmem:[#allocation2 + $0x350] sm:$0xff] %v799
          %989 = vst [vmem:[#allocation2 + $0x358] sm:$0xff] %v873
          %990 = vst [vmem:[#allocation2 + $0x360] sm:$0xff] %v506
          %991 = vst [vmem:[#allocation2 + $0x368] sm:$0xff] %v580
          %992 = vst [vmem:[#allocation2 + $0x370] sm:$0xff] %v654
          %993 = vst [vmem:[#allocation2 + $0x378] sm:$0xff] %v728
          %994 = vst [vmem:[#allocation2 + $0x380] sm:$0xff] %v802
          %995 = vst [vmem:[#allocation2 + $0x388] sm:$0xff] %v876
        $region60: #{tpu_custom_call.1} parent=39 // pred_fallthru
          _
        %p996 = scmp.gt.s32.totalorder %s29, 0
        // Predicated region
        $region61: #{tpu_custom_call.1} parent=39 // pred_check
          %p997 = pneg %p996
        $region62: #{tpu_custom_call.1} parent=39 // pred_check_branch
          %999 = sbr.rel (%p997) target = $region64
        $region63: #{tpu_custom_call.1} parent=39 // pred_region
          %v1000 = vld [vmem:[#allocation2] sm:$0xff]
          %v1001 = vld [vmem:[#allocation2 + $0x8] sm:$0xff]
          %v1002 = vld [vmem:[#allocation2 + $0x10] sm:$0xff]
          %v1003 = vld [vmem:[#allocation2 + $0x18] sm:$0xff]
          %v1004 = vld [vmem:[#allocation2 + $0x20] sm:$0xff]
          %v1005 = vld [vmem:[#allocation2 + $0x28] sm:$0xff]
          %v1006 = vld [vmem:[#allocation2 + $0x30] sm:$0xff]
          %v1007 = vld [vmem:[#allocation2 + $0x38] sm:$0xff]
          %v1008 = vld [vmem:[#allocation2 + $0x40] sm:$0xff]
          %v1009 = vld [vmem:[#allocation2 + $0x48] sm:$0xff]
          %v1010 = vld [vmem:[#allocation2 + $0x50] sm:$0xff]
          %v1011 = vld [vmem:[#allocation2 + $0x58] sm:$0xff]
          %v1012 = vld [vmem:[#allocation2 + $0x60] sm:$0xff]
          %v1013 = vld [vmem:[#allocation2 + $0x68] sm:$0xff]
          %v1014 = vld [vmem:[#allocation2 + $0x70] sm:$0xff]
          %v1015 = vld [vmem:[#allocation2 + $0x78] sm:$0xff]
          %v1016 = vld [vmem:[#allocation2 + $0x80] sm:$0xff]
          %v1017 = vld [vmem:[#allocation2 + $0x88] sm:$0xff]
          %v1018 = vld [vmem:[#allocation2 + $0x90] sm:$0xff]
          %v1019 = vld [vmem:[#allocation2 + $0x98] sm:$0xff]
          %v1020 = vld [vmem:[#allocation2 + $0xa0] sm:$0xff]
          %v1021 = vld [vmem:[#allocation2 + $0xa8] sm:$0xff]
          %v1022 = vld [vmem:[#allocation2 + $0xb0] sm:$0xff]
          %v1023 = vld [vmem:[#allocation2 + $0xb8] sm:$0xff]
          %v1024 = vld [vmem:[#allocation2 + $0xc0] sm:$0xff]
          %v1025 = vld [vmem:[#allocation2 + $0xc8] sm:$0xff]
          %v1026 = vld [vmem:[#allocation2 + $0xd0] sm:$0xff]
          %v1027 = vld [vmem:[#allocation2 + $0xd8] sm:$0xff]
          %v1028 = vld [vmem:[#allocation2 + $0xe0] sm:$0xff]
          %v1029 = vld [vmem:[#allocation2 + $0xe8] sm:$0xff]
          %v1030 = vld [vmem:[#allocation2 + $0xf0] sm:$0xff]
          %v1031 = vld [vmem:[#allocation2 + $0xf8] sm:$0xff]
          %v1032 = vld [vmem:[#allocation2 + $0x100] sm:$0xff]
          %v1033 = vld [vmem:[#allocation2 + $0x108] sm:$0xff]
          %v1034 = vld [vmem:[#allocation2 + $0x110] sm:$0xff]
          %v1035 = vld [vmem:[#allocation2 + $0x118] sm:$0xff]
          %v1036 = vld [vmem:[#allocation2 + $0x120] sm:$0xff]
          %v1037 = vld [vmem:[#allocation2 + $0x128] sm:$0xff]
          %v1038 = vld [vmem:[#allocation2 + $0x130] sm:$0xff]
          %v1039 = vld [vmem:[#allocation2 + $0x138] sm:$0xff]
          %v1040 = vld [vmem:[#allocation2 + $0x140] sm:$0xff]
          %v1041 = vld [vmem:[#allocation2 + $0x148] sm:$0xff]
          %v1042 = vld [vmem:[#allocation2 + $0x150] sm:$0xff]
          %v1043 = vld [vmem:[#allocation2 + $0x158] sm:$0xff]
          %v1044 = vld [vmem:[#allocation2 + $0x160] sm:$0xff]
          %v1045 = vld [vmem:[#allocation2 + $0x168] sm:$0xff]
          %v1046 = vld [vmem:[#allocation2 + $0x170] sm:$0xff]
          %v1047 = vld [vmem:[#allocation2 + $0x178] sm:$0xff]
          %v1048 = vld [vmem:[#allocation2 + $0x180] sm:$0xff]
          %v1049 = vld [vmem:[#allocation2 + $0x188] sm:$0xff]
          %v1050 = vld [vmem:[#allocation2 + $0x190] sm:$0xff]
          %v1051 = vld [vmem:[#allocation2 + $0x198] sm:$0xff]
          %v1052 = vld [vmem:[#allocation2 + $0x1a0] sm:$0xff]
          %v1053 = vld [vmem:[#allocation2 + $0x1a8] sm:$0xff]
          %v1054 = vld [vmem:[#allocation2 + $0x1b0] sm:$0xff]
          %v1055 = vld [vmem:[#allocation2 + $0x1b8] sm:$0xff]
          %v1056 = vld [vmem:[#allocation2 + $0x1c0] sm:$0xff]
          %v1057 = vld [vmem:[#allocation2 + $0x1c8] sm:$0xff]
          %v1058 = vld [vmem:[#allocation2 + $0x1d0] sm:$0xff]
          %v1059 = vld [vmem:[#allocation2 + $0x1d8] sm:$0xff]
          %v1060 = vld [vmem:[#allocation2 + $0x1e0] sm:$0xff]
          %v1061 = vld [vmem:[#allocation2 + $0x1e8] sm:$0xff]
          %v1062 = vld [vmem:[#allocation2 + $0x1f0] sm:$0xff]
          %v1063 = vld [vmem:[#allocation2 + $0x1f8] sm:$0xff]
          %v1064 = vld [vmem:[#allocation2 + $0x200] sm:$0xff]
          %v1065 = vld [vmem:[#allocation2 + $0x208] sm:$0xff]
          %v1066 = vld [vmem:[#allocation2 + $0x210] sm:$0xff]
          %v1067 = vld [vmem:[#allocation2 + $0x218] sm:$0xff]
          %v1068 = vld [vmem:[#allocation2 + $0x220] sm:$0xff]
          %v1069 = vld [vmem:[#allocation2 + $0x228] sm:$0xff]
          %v1070 = vld [vmem:[#allocation2 + $0x230] sm:$0xff]
          %v1071 = vld [vmem:[#allocation2 + $0x238] sm:$0xff]
          %v1072 = vld [vmem:[#allocation2 + $0x240] sm:$0xff]
          %v1073 = vld [vmem:[#allocation2 + $0x248] sm:$0xff]
          %v1074 = vld [vmem:[#allocation2 + $0x250] sm:$0xff]
          %v1075 = vld [vmem:[#allocation2 + $0x258] sm:$0xff]
          %v1076 = vld [vmem:[#allocation2 + $0x260] sm:$0xff]
          %v1077 = vld [vmem:[#allocation2 + $0x268] sm:$0xff]
          %v1078 = vld [vmem:[#allocation2 + $0x270] sm:$0xff]
          %v1079 = vld [vmem:[#allocation2 + $0x278] sm:$0xff]
          %v1080 = vld [vmem:[#allocation2 + $0x280] sm:$0xff]
          %v1081 = vld [vmem:[#allocation2 + $0x288] sm:$0xff]
          %v1082 = vld [vmem:[#allocation2 + $0x290] sm:$0xff]
          %v1083 = vld [vmem:[#allocation2 + $0x298] sm:$0xff]
          %v1084 = vld [vmem:[#allocation2 + $0x2a0] sm:$0xff]
          %v1085 = vld [vmem:[#allocation2 + $0x2a8] sm:$0xff]
          %v1086 = vld [vmem:[#allocation2 + $0x2b0] sm:$0xff]
          %v1087 = vld [vmem:[#allocation2 + $0x2b8] sm:$0xff]
          %v1088 = vld [vmem:[#allocation2 + $0x2c0] sm:$0xff]
          %v1089 = vld [vmem:[#allocation2 + $0x2c8] sm:$0xff]
          %v1090 = vld [vmem:[#allocation2 + $0x2d0] sm:$0xff]
          %v1091 = vld [vmem:[#allocation2 + $0x2d8] sm:$0xff]
          %v1092 = vld [vmem:[#allocation2 + $0x2e0] sm:$0xff]
          %v1093 = vld [vmem:[#allocation2 + $0x2e8] sm:$0xff]
          %v1094 = vld [vmem:[#allocation2 + $0x2f0] sm:$0xff]
          %v1095 = vld [vmem:[#allocation2 + $0x2f8] sm:$0xff]
          %v1096 = vld [vmem:[#allocation2 + $0x300] sm:$0xff]
          %v1097 = vld [vmem:[#allocation2 + $0x308] sm:$0xff]
          %v1098 = vld [vmem:[#allocation2 + $0x310] sm:$0xff]
          %v1099 = vld [vmem:[#allocation2 + $0x318] sm:$0xff]
          %v1100 = vld [vmem:[#allocation2 + $0x320] sm:$0xff]
          %v1101 = vld [vmem:[#allocation2 + $0x328] sm:$0xff]
          %v1102 = vld [vmem:[#allocation2 + $0x330] sm:$0xff]
          %v1103 = vld [vmem:[#allocation2 + $0x338] sm:$0xff]
          %v1104 = vld [vmem:[#allocation2 + $0x340] sm:$0xff]
          %v1105 = vld [vmem:[#allocation2 + $0x348] sm:$0xff]
          %v1106 = vld [vmem:[#allocation2 + $0x350] sm:$0xff]
          %v1107 = vld [vmem:[#allocation2 + $0x358] sm:$0xff]
          %v1108 = vld [vmem:[#allocation2 + $0x360] sm:$0xff]
          %v1109 = vld [vmem:[#allocation2 + $0x368] sm:$0xff]
          %v1110 = vld [vmem:[#allocation2 + $0x370] sm:$0xff]
          %v1111 = vld [vmem:[#allocation2 + $0x378] sm:$0xff]
          %v1112 = vld [vmem:[#allocation2 + $0x380] sm:$0xff]
          %v1113 = vld [vmem:[#allocation2 + $0x388] sm:$0xff]
          %v1114 = vadd.f32 %v1000, %v452
          %v1115 = vadd.f32 %v1001, %v526
          %v1116 = vadd.f32 %v1002, %v600
          %v1117 = vadd.f32 %v1003, %v674
          %v1118 = vadd.f32 %v1004, %v748
          %v1119 = vadd.f32 %v1005, %v822
          %v1120 = vadd.f32 %v1006, %v455
          %v1121 = vadd.f32 %v1007, %v529
          %v1122 = vadd.f32 %v1008, %v603
          %v1123 = vadd.f32 %v1009, %v677
          %v1124 = vadd.f32 %v1010, %v751
          %v1125 = vadd.f32 %v1011, %v825
          %v1126 = vadd.f32 %v1012, %v458
          %v1127 = vadd.f32 %v1013, %v532
          %v1128 = vadd.f32 %v1014, %v606
          %v1129 = vadd.f32 %v1015, %v680
          %v1130 = vadd.f32 %v1016, %v754
          %v1131 = vadd.f32 %v1017, %v828
          %v1132 = vadd.f32 %v1018, %v461
          %v1133 = vadd.f32 %v1019, %v535
          %v1134 = vadd.f32 %v1020, %v609
          %v1135 = vadd.f32 %v1021, %v683
          %v1136 = vadd.f32 %v1022, %v757
          %v1137 = vadd.f32 %v1023, %v831
          %v1138 = vadd.f32 %v1024, %v464
          %v1139 = vadd.f32 %v1025, %v538
          %v1140 = vadd.f32 %v1026, %v612
          %v1141 = vadd.f32 %v1027, %v686
          %v1142 = vadd.f32 %v1028, %v760
          %v1143 = vadd.f32 %v1029, %v834
          %v1144 = vadd.f32 %v1030, %v467
          %v1145 = vadd.f32 %v1031, %v541
          %v1146 = vadd.f32 %v1032, %v615
          %v1147 = vadd.f32 %v1033, %v689
          %v1148 = vadd.f32 %v1034, %v763
          %v1149 = vadd.f32 %v1035, %v837
          %v1150 = vadd.f32 %v1036, %v470
          %v1151 = vadd.f32 %v1037, %v544
          %v1152 = vadd.f32 %v1038, %v618
          %v1153 = vadd.f32 %v1039, %v692
          %v1154 = vadd.f32 %v1040, %v766
          %v1155 = vadd.f32 %v1041, %v840
          %v1156 = vadd.f32 %v1042, %v473
          %v1157 = vadd.f32 %v1043, %v547
          %v1158 = vadd.f32 %v1044, %v621
          %v1159 = vadd.f32 %v1045, %v695
          %v1160 = vadd.f32 %v1046, %v769
          %v1161 = vadd.f32 %v1047, %v843
          %v1162 = vadd.f32 %v1048, %v476
          %v1163 = vadd.f32 %v1049, %v550
          %v1164 = vadd.f32 %v1050, %v624
          %v1165 = vadd.f32 %v1051, %v698
          %v1166 = vadd.f32 %v1052, %v772
          %v1167 = vadd.f32 %v1053, %v846
          %v1168 = vadd.f32 %v1054, %v479
          %v1169 = vadd.f32 %v1055, %v553
          %v1170 = vadd.f32 %v1056, %v627
          %v1171 = vadd.f32 %v1057, %v701
          %v1172 = vadd.f32 %v1058, %v775
          %v1173 = vadd.f32 %v1059, %v849
          %v1174 = vadd.f32 %v1060, %v482
          %v1175 = vadd.f32 %v1061, %v556
          %v1176 = vadd.f32 %v1062, %v630
          %v1177 = vadd.f32 %v1063, %v704
          %v1178 = vadd.f32 %v1064, %v778
          %v1179 = vadd.f32 %v1065, %v852
          %v1180 = vadd.f32 %v1066, %v485
          %v1181 = vadd.f32 %v1067, %v559
          %v1182 = vadd.f32 %v1068, %v633
          %v1183 = vadd.f32 %v1069, %v707
          %v1184 = vadd.f32 %v1070, %v781
          %v1185 = vadd.f32 %v1071, %v855
          %v1186 = vadd.f32 %v1072, %v488
          %v1187 = vadd.f32 %v1073, %v562
          %v1188 = vadd.f32 %v1074, %v636
          %v1189 = vadd.f32 %v1075, %v710
          %v1190 = vadd.f32 %v1076, %v784
          %v1191 = vadd.f32 %v1077, %v858
          %v1192 = vadd.f32 %v1078, %v491
          %v1193 = vadd.f32 %v1079, %v565
          %v1194 = vadd.f32 %v1080, %v639
          %v1195 = vadd.f32 %v1081, %v713
          %v1196 = vadd.f32 %v1082, %v787
          %v1197 = vadd.f32 %v1083, %v861
          %v1198 = vadd.f32 %v1084, %v494
          %v1199 = vadd.f32 %v1085, %v568
          %v1200 = vadd.f32 %v1086, %v642
          %v1201 = vadd.f32 %v1087, %v716
          %v1202 = vadd.f32 %v1088, %v790
          %v1203 = vadd.f32 %v1089, %v864
          %v1204 = vadd.f32 %v1090, %v497
          %v1205 = vadd.f32 %v1091, %v571
          %v1206 = vadd.f32 %v1092, %v645
          %v1207 = vadd.f32 %v1093, %v719
          %v1208 = vadd.f32 %v1094, %v793
          %v1209 = vadd.f32 %v1095, %v867
          %v1210 = vadd.f32 %v1096, %v500
          %v1211 = vadd.f32 %v1097, %v574
          %v1212 = vadd.f32 %v1098, %v648
          %v1213 = vadd.f32 %v1099, %v722
          %v1214 = vadd.f32 %v1100, %v796
          %v1215 = vadd.f32 %v1101, %v870
          %v1216 = vadd.f32 %v1102, %v503
          %v1217 = vadd.f32 %v1103, %v577
          %v1218 = vadd.f32 %v1104, %v651
          %v1219 = vadd.f32 %v1105, %v725
          %v1220 = vadd.f32 %v1106, %v799
          %v1221 = vadd.f32 %v1107, %v873
          %v1222 = vadd.f32 %v1108, %v506
          %v1223 = vadd.f32 %v1109, %v580
          %v1224 = vadd.f32 %v1110, %v654
          %v1225 = vadd.f32 %v1111, %v728
          %v1226 = vadd.f32 %v1112, %v802
          %v1227 = vadd.f32 %v1113, %v876
          %1228 = vst [vmem:[#allocation2] sm:$0xff] %v1114
          %1229 = vst [vmem:[#allocation2 + $0x8] sm:$0xff] %v1115
          %1230 = vst [vmem:[#allocation2 + $0x10] sm:$0xff] %v1116
          %1231 = vst [vmem:[#allocation2 + $0x18] sm:$0xff] %v1117
          %1232 = vst [vmem:[#allocation2 + $0x20] sm:$0xff] %v1118
          %1233 = vst [vmem:[#allocation2 + $0x28] sm:$0xff] %v1119
          %1234 = vst [vmem:[#allocation2 + $0x30] sm:$0xff] %v1120
          %1235 = vst [vmem:[#allocation2 + $0x38] sm:$0xff] %v1121
          %1236 = vst [vmem:[#allocation2 + $0x40] sm:$0xff] %v1122
          %1237 = vst [vmem:[#allocation2 + $0x48] sm:$0xff] %v1123
          %1238 = vst [vmem:[#allocation2 + $0x50] sm:$0xff] %v1124
          %1239 = vst [vmem:[#allocation2 + $0x58] sm:$0xff] %v1125
          %1240 = vst [vmem:[#allocation2 + $0x60] sm:$0xff] %v1126
          %1241 = vst [vmem:[#allocation2 + $0x68] sm:$0xff] %v1127
          %1242 = vst [vmem:[#allocation2 + $0x70] sm:$0xff] %v1128
          %1243 = vst [vmem:[#allocation2 + $0x78] sm:$0xff] %v1129
          %1244 = vst [vmem:[#allocation2 + $0x80] sm:$0xff] %v1130
          %1245 = vst [vmem:[#allocation2 + $0x88] sm:$0xff] %v1131
          %1246 = vst [vmem:[#allocation2 + $0x90] sm:$0xff] %v1132
          %1247 = vst [vmem:[#allocation2 + $0x98] sm:$0xff] %v1133
          %1248 = vst [vmem:[#allocation2 + $0xa0] sm:$0xff] %v1134
          %1249 = vst [vmem:[#allocation2 + $0xa8] sm:$0xff] %v1135
          %1250 = vst [vmem:[#allocation2 + $0xb0] sm:$0xff] %v1136
          %1251 = vst [vmem:[#allocation2 + $0xb8] sm:$0xff] %v1137
          %1252 = vst [vmem:[#allocation2 + $0xc0] sm:$0xff] %v1138
          %1253 = vst [vmem:[#allocation2 + $0xc8] sm:$0xff] %v1139
          %1254 = vst [vmem:[#allocation2 + $0xd0] sm:$0xff] %v1140
          %1255 = vst [vmem:[#allocation2 + $0xd8] sm:$0xff] %v1141
          %1256 = vst [vmem:[#allocation2 + $0xe0] sm:$0xff] %v1142
          %1257 = vst [vmem:[#allocation2 + $0xe8] sm:$0xff] %v1143
          %1258 = vst [vmem:[#allocation2 + $0xf0] sm:$0xff] %v1144
          %1259 = vst [vmem:[#allocation2 + $0xf8] sm:$0xff] %v1145
          %1260 = vst [vmem:[#allocation2 + $0x100] sm:$0xff] %v1146
          %1261 = vst [vmem:[#allocation2 + $0x108] sm:$0xff] %v1147
          %1262 = vst [vmem:[#allocation2 + $0x110] sm:$0xff] %v1148
          %1263 = vst [vmem:[#allocation2 + $0x118] sm:$0xff] %v1149
          %1264 = vst [vmem:[#allocation2 + $0x120] sm:$0xff] %v1150
          %1265 = vst [vmem:[#allocation2 + $0x128] sm:$0xff] %v1151
          %1266 = vst [vmem:[#allocation2 + $0x130] sm:$0xff] %v1152
          %1267 = vst [vmem:[#allocation2 + $0x138] sm:$0xff] %v1153
          %1268 = vst [vmem:[#allocation2 + $0x140] sm:$0xff] %v1154
          %1269 = vst [vmem:[#allocation2 + $0x148] sm:$0xff] %v1155
          %1270 = vst [vmem:[#allocation2 + $0x150] sm:$0xff] %v1156
          %1271 = vst [vmem:[#allocation2 + $0x158] sm:$0xff] %v1157
          %1272 = vst [vmem:[#allocation2 + $0x160] sm:$0xff] %v1158
          %1273 = vst [vmem:[#allocation2 + $0x168] sm:$0xff] %v1159
          %1274 = vst [vmem:[#allocation2 + $0x170] sm:$0xff] %v1160
          %1275 = vst [vmem:[#allocation2 + $0x178] sm:$0xff] %v1161
          %1276 = vst [vmem:[#allocation2 + $0x180] sm:$0xff] %v1162
          %1277 = vst [vmem:[#allocation2 + $0x188] sm:$0xff] %v1163
          %1278 = vst [vmem:[#allocation2 + $0x190] sm:$0xff] %v1164
          %1279 = vst [vmem:[#allocation2 + $0x198] sm:$0xff] %v1165
          %1280 = vst [vmem:[#allocation2 + $0x1a0] sm:$0xff] %v1166
          %1281 = vst [vmem:[#allocation2 + $0x1a8] sm:$0xff] %v1167
          %1282 = vst [vmem:[#allocation2 + $0x1b0] sm:$0xff] %v1168
          %1283 = vst [vmem:[#allocation2 + $0x1b8] sm:$0xff] %v1169
          %1284 = vst [vmem:[#allocation2 + $0x1c0] sm:$0xff] %v1170
          %1285 = vst [vmem:[#allocation2 + $0x1c8] sm:$0xff] %v1171
          %1286 = vst [vmem:[#allocation2 + $0x1d0] sm:$0xff] %v1172
          %1287 = vst [vmem:[#allocation2 + $0x1d8] sm:$0xff] %v1173
          %1288 = vst [vmem:[#allocation2 + $0x1e0] sm:$0xff] %v1174
          %1289 = vst [vmem:[#allocation2 + $0x1e8] sm:$0xff] %v1175
          %1290 = vst [vmem:[#allocation2 + $0x1f0] sm:$0xff] %v1176
          %1291 = vst [vmem:[#allocation2 + $0x1f8] sm:$0xff] %v1177
          %1292 = vst [vmem:[#allocation2 + $0x200] sm:$0xff] %v1178
          %1293 = vst [vmem:[#allocation2 + $0x208] sm:$0xff] %v1179
          %1294 = vst [vmem:[#allocation2 + $0x210] sm:$0xff] %v1180
          %1295 = vst [vmem:[#allocation2 + $0x218] sm:$0xff] %v1181
          %1296 = vst [vmem:[#allocation2 + $0x220] sm:$0xff] %v1182
          %1297 = vst [vmem:[#allocation2 + $0x228] sm:$0xff] %v1183
          %1298 = vst [vmem:[#allocation2 + $0x230] sm:$0xff] %v1184
          %1299 = vst [vmem:[#allocation2 + $0x238] sm:$0xff] %v1185
          %1300 = vst [vmem:[#allocation2 + $0x240] sm:$0xff] %v1186
          %1301 = vst [vmem:[#allocation2 + $0x248] sm:$0xff] %v1187
          %1302 = vst [vmem:[#allocation2 + $0x250] sm:$0xff] %v1188
          %1303 = vst [vmem:[#allocation2 + $0x258] sm:$0xff] %v1189
          %1304 = vst [vmem:[#allocation2 + $0x260] sm:$0xff] %v1190
          %1305 = vst [vmem:[#allocation2 + $0x268] sm:$0xff] %v1191
          %1306 = vst [vmem:[#allocation2 + $0x270] sm:$0xff] %v1192
          %1307 = vst [vmem:[#allocation2 + $0x278] sm:$0xff] %v1193
          %1308 = vst [vmem:[#allocation2 + $0x280] sm:$0xff] %v1194
          %1309 = vst [vmem:[#allocation2 + $0x288] sm:$0xff] %v1195
          %1310 = vst [vmem:[#allocation2 + $0x290] sm:$0xff] %v1196
          %1311 = vst [vmem:[#allocation2 + $0x298] sm:$0xff] %v1197
          %1312 = vst [vmem:[#allocation2 + $0x2a0] sm:$0xff] %v1198
          %1313 = vst [vmem:[#allocation2 + $0x2a8] sm:$0xff] %v1199
          %1314 = vst [vmem:[#allocation2 + $0x2b0] sm:$0xff] %v1200
          %1315 = vst [vmem:[#allocation2 + $0x2b8] sm:$0xff] %v1201
          %1316 = vst [vmem:[#allocation2 + $0x2c0] sm:$0xff] %v1202
          %1317 = vst [vmem:[#allocation2 + $0x2c8] sm:$0xff] %v1203
          %1318 = vst [vmem:[#allocation2 + $0x2d0] sm:$0xff] %v1204
          %1319 = vst [vmem:[#allocation2 + $0x2d8] sm:$0xff] %v1205
          %1320 = vst [vmem:[#allocation2 + $0x2e0] sm:$0xff] %v1206
          %1321 = vst [vmem:[#allocation2 + $0x2e8] sm:$0xff] %v1207
          %1322 = vst [vmem:[#allocation2 + $0x2f0] sm:$0xff] %v1208
          %1323 = vst [vmem:[#allocation2 + $0x2f8] sm:$0xff] %v1209
          %1324 = vst [vmem:[#allocation2 + $0x300] sm:$0xff] %v1210
          %1325 = vst [vmem:[#allocation2 + $0x308] sm:$0xff] %v1211
          %1326 = vst [vmem:[#allocation2 + $0x310] sm:$0xff] %v1212
          %1327 = vst [vmem:[#allocation2 + $0x318] sm:$0xff] %v1213
          %1328 = vst [vmem:[#allocation2 + $0x320] sm:$0xff] %v1214
          %1329 = vst [vmem:[#allocation2 + $0x328] sm:$0xff] %v1215
          %1330 = vst [vmem:[#allocation2 + $0x330] sm:$0xff] %v1216
          %1331 = vst [vmem:[#allocation2 + $0x338] sm:$0xff] %v1217
          %1332 = vst [vmem:[#allocation2 + $0x340] sm:$0xff] %v1218
          %1333 = vst [vmem:[#allocation2 + $0x348] sm:$0xff] %v1219
          %1334 = vst [vmem:[#allocation2 + $0x350] sm:$0xff] %v1220
          %1335 = vst [vmem:[#allocation2 + $0x358] sm:$0xff] %v1221
          %1336 = vst [vmem:[#allocation2 + $0x360] sm:$0xff] %v1222
          %1337 = vst [vmem:[#allocation2 + $0x368] sm:$0xff] %v1223
          %1338 = vst [vmem:[#allocation2 + $0x370] sm:$0xff] %v1224
          %1339 = vst [vmem:[#allocation2 + $0x378] sm:$0xff] %v1225
          %1340 = vst [vmem:[#allocation2 + $0x380] sm:$0xff] %v1226
          %1341 = vst [vmem:[#allocation2 + $0x388] sm:$0xff] %v1227
        $region64: #{tpu_custom_call.1} parent=39 // pred_fallthru
          _
        // Predicated region
        $region65: #{tpu_custom_call.1} parent=39 // pred_check
          %p1342 = pneg %p878
        $region66: #{tpu_custom_call.1} parent=39 // pred_check_branch
          %1344 = sbr.rel (%p1342) target = $region68
        $region67: #{tpu_custom_call.1} parent=39 // pred_region
          %v1345 = vld [vmem:[#allocation2] sm:$0xff]
          %v1346 = vld [vmem:[#allocation2 + $0x8] sm:$0xff]
          %v1347 = vld [vmem:[#allocation2 + $0x30] sm:$0xff]
          %v1348 = vld [vmem:[#allocation2 + $0x38] sm:$0xff]
          %v1349 = vld [vmem:[#allocation2 + $0x40] sm:$0xff]
          %v1350 = vld [vmem:[#allocation2 + $0x60] sm:$0xff]
          %v1351 = vld [vmem:[#allocation2 + $0x68] sm:$0xff]
          %v1352 = vld [vmem:[#allocation2 + $0x70] sm:$0xff]
          %v1353 = vld [vmem:[#allocation2 + $0x78] sm:$0xff]
          %v1354 = vld [vmem:[#allocation2 + $0x80] sm:$0xff]
          %v1355 = vld [vmem:[#allocation2 + $0x90] sm:$0xff]
          %v1356 = vld [vmem:[#allocation2 + $0x98] sm:$0xff]
          %v1357 = vld [vmem:[#allocation2 + $0xa0] sm:$0xff]
          %v1358 = vld [vmem:[#allocation2 + $0xa8] sm:$0xff]
          %v1359 = vld [vmem:[#allocation2 + $0xb0] sm:$0xff]
          %v1360 = vld [vmem:[#allocation2 + $0xb8] sm:$0xff]
          %v1361 = vld [vmem:[#allocation2 + $0xc0] sm:$0xff]
          %v1362 = vld [vmem:[#allocation2 + $0xc8] sm:$0xff]
          %v1363 = vld [vmem:[#allocation2 + $0xd0] sm:$0xff]
          %v1364 = vld [vmem:[#allocation2 + $0xd8] sm:$0xff]
          %v1365 = vld [vmem:[#allocation2 + $0xe0] sm:$0xff]
          %v1366 = vld [vmem:[#allocation2 + $0xe8] sm:$0xff]
          %v1367 = vld [vmem:[#allocation2 + $0xf0] sm:$0xff]
          %v1368 = vld [vmem:[#allocation2 + $0xf8] sm:$0xff]
          %v1369 = vld [vmem:[#allocation2 + $0x100] sm:$0xff]
          %v1370 = vld [vmem:[#allocation2 + $0x108] sm:$0xff]
          %v1371 = vld [vmem:[#allocation2 + $0x110] sm:$0xff]
          %v1372 = vld [vmem:[#allocation2 + $0x118] sm:$0xff]
          %v1373 = vld [vmem:[#allocation2 + $0x120] sm:$0xff]
          %v1374 = vld [vmem:[#allocation2 + $0x128] sm:$0xff]
          %v1375 = vld [vmem:[#allocation2 + $0x130] sm:$0xff]
          %v1376 = vld [vmem:[#allocation2 + $0x138] sm:$0xff]
          %v1377 = vld [vmem:[#allocation2 + $0x140] sm:$0xff]
          %v1378 = vld [vmem:[#allocation2 + $0x148] sm:$0xff]
          %v1379 = vld [vmem:[#allocation2 + $0x150] sm:$0xff]
          %v1380 = vld [vmem:[#allocation2 + $0x158] sm:$0xff]
          %v1381 = vld [vmem:[#allocation2 + $0x160] sm:$0xff]
          %v1382 = vld [vmem:[#allocation2 + $0x168] sm:$0xff]
          %v1383 = vld [vmem:[#allocation2 + $0x170] sm:$0xff]
          %v1384 = vld [vmem:[#allocation2 + $0x178] sm:$0xff]
          %v1385 = vld [vmem:[#allocation2 + $0x180] sm:$0xff]
          %v1386 = vld [vmem:[#allocation2 + $0x188] sm:$0xff]
          %v1387 = vld [vmem:[#allocation2 + $0x190] sm:$0xff]
          %v1388 = vld [vmem:[#allocation2 + $0x198] sm:$0xff]
          %v1389 = vld [vmem:[#allocation2 + $0x1a0] sm:$0xff]
          %v1390 = vld [vmem:[#allocation2 + $0x1a8] sm:$0xff]
          %v1391 = vld [vmem:[#allocation2 + $0x1b0] sm:$0xff]
          %v1392 = vld [vmem:[#allocation2 + $0x1b8] sm:$0xff]
          %v1393 = vld [vmem:[#allocation2 + $0x1c0] sm:$0xff]
          %v1394 = vld [vmem:[#allocation2 + $0x1c8] sm:$0xff]
          %v1395 = vld [vmem:[#allocation2 + $0x1d0] sm:$0xff]
          %v1396 = vld [vmem:[#allocation2 + $0x1d8] sm:$0xff]
          %v1397 = vld [vmem:[#allocation2 + $0x1e0] sm:$0xff]
          %v1398 = vld [vmem:[#allocation2 + $0x1e8] sm:$0xff]
          %v1399 = vld [vmem:[#allocation2 + $0x1f0] sm:$0xff]
          %v1400 = vld [vmem:[#allocation2 + $0x1f8] sm:$0xff]
          %v1401 = vld [vmem:[#allocation2 + $0x200] sm:$0xff]
          %v1402 = vld [vmem:[#allocation2 + $0x208] sm:$0xff]
          %v1403 = vld [vmem:[#allocation2 + $0x210] sm:$0xff]
          %v1404 = vld [vmem:[#allocation2 + $0x218] sm:$0xff]
          %v1405 = vld [vmem:[#allocation2 + $0x220] sm:$0xff]
          %v1406 = vld [vmem:[#allocation2 + $0x228] sm:$0xff]
          %v1407 = vld [vmem:[#allocation2 + $0x230] sm:$0xff]
          %v1408 = vld [vmem:[#allocation2 + $0x238] sm:$0xff]
          %v1409 = vld [vmem:[#allocation2 + $0x240] sm:$0xff]
          %v1410 = vld [vmem:[#allocation2 + $0x248] sm:$0xff]
          %v1411 = vld [vmem:[#allocation2 + $0x250] sm:$0xff]
          %v1412 = vld [vmem:[#allocation2 + $0x258] sm:$0xff]
          %v1413 = vld [vmem:[#allocation2 + $0x260] sm:$0xff]
          %v1414 = vld [vmem:[#allocation2 + $0x268] sm:$0xff]
          %v1415 = vld [vmem:[#allocation2 + $0x270] sm:$0xff]
          %v1416 = vld [vmem:[#allocation2 + $0x278] sm:$0xff]
          %v1417 = vld [vmem:[#allocation2 + $0x280] sm:$0xff]
          %v1418 = vld [vmem:[#allocation2 + $0x288] sm:$0xff]
          %v1419 = vld [vmem:[#allocation2 + $0x290] sm:$0xff]
          %v1420 = vld [vmem:[#allocation2 + $0x298] sm:$0xff]
          %v1421 = vld [vmem:[#allocation2 + $0x2a0] sm:$0xff]
          %v1422 = vld [vmem:[#allocation2 + $0x2a8] sm:$0xff]
          %v1423 = vld [vmem:[#allocation2 + $0x2b0] sm:$0xff]
          %v1424 = vld [vmem:[#allocation2 + $0x2b8] sm:$0xff]
          %v1425 = vld [vmem:[#allocation2 + $0x2c0] sm:$0xff]
          %v1426 = vld [vmem:[#allocation2 + $0x2c8] sm:$0xff]
          %v1427 = vld [vmem:[#allocation2 + $0x2d0] sm:$0xff]
          %v1428 = vld [vmem:[#allocation2 + $0x2d8] sm:$0xff]
          %v1429 = vld [vmem:[#allocation2 + $0x2e0] sm:$0xff]
          %v1430 = vld [vmem:[#allocation2 + $0x2e8] sm:$0xff]
          %v1431 = vld [vmem:[#allocation2 + $0x2f0] sm:$0xff]
          %v1432 = vld [vmem:[#allocation2 + $0x2f8] sm:$0xff]
          %v1433 = vld [vmem:[#allocation2 + $0x308] sm:$0xff]
          %v1434 = vld [vmem:[#allocation2 + $0x310] sm:$0xff]
          %v1435 = vld [vmem:[#allocation2 + $0x318] sm:$0xff]
          %v1436 = vld [vmem:[#allocation2 + $0x320] sm:$0xff]
          %v1437 = vld [vmem:[#allocation2 + $0x328] sm:$0xff]
          %v1438 = vld [vmem:[#allocation2 + $0x348] sm:$0xff]
          %v1439 = vld [vmem:[#allocation2 + $0x350] sm:$0xff]
          %v1440 = vld [vmem:[#allocation2 + $0x358] sm:$0xff]
          %v1441 = vld [vmem:[#allocation2 + $0x380] sm:$0xff]
          %v1442 = vld [vmem:[#allocation2 + $0x388] sm:$0xff]
          %1475 = vrot.lane.b32.xlu0 %v1348, 64
          %v1476 = vpop.permute.xlu0 %1475
          %1477 = vrot.lane.b32.xlu0 %v1349, 64
          %v1478 = vpop.permute.xlu0 %1477
          %1479 = vrot.lane.b32.xlu0 %v1351, 64
          %v1480 = vpop.permute.xlu0 %1479
          %1481 = vrot.lane.b32.xlu0 %v1352, 64
          %v1482 = vpop.permute.xlu0 %1481
          %1483 = vrot.lane.b32.xlu0 %v1356, 64
          %v1484 = vpop.permute.xlu0 %1483
          %1485 = vrot.lane.b32.xlu0 %v1357, 64
          %v1486 = vpop.permute.xlu0 %1485
          %1487 = vrot.lane.b32.xlu0 %v1362, 64
          %v1488 = vpop.permute.xlu0 %1487
          %1489 = vrot.lane.b32.xlu0 %v1363, 64
          %v1490 = vpop.permute.xlu0 %1489
          %1491 = vrot.lane.b32.xlu0 %v1368, 64
          %v1492 = vpop.permute.xlu0 %1491
          %1493 = vrot.lane.b32.xlu0 %v1369, 64
          %v1494 = vpop.permute.xlu0 %1493
          %1495 = vrot.lane.b32.xlu0 %v1374, 64
          %v1496 = vpop.permute.xlu0 %1495
          %1497 = vrot.lane.b32.xlu0 %v1375, 64
          %v1498 = vpop.permute.xlu0 %1497
          %1499 = vrot.lane.b32.xlu0 %v1380, 64
          %v1500 = vpop.permute.xlu0 %1499
          %1501 = vrot.lane.b32.xlu0 %v1381, 64
          %v1502 = vpop.permute.xlu0 %1501
          %1503 = vrot.lane.b32.xlu0 %v1386, 64
          %v1504 = vpop.permute.xlu0 %1503
          %1505 = vrot.lane.b32.xlu0 %v1387, 64
          %v1506 = vpop.permute.xlu0 %1505
          %1507 = vrot.lane.b32.xlu0 %v1392, 64
          %v1508 = vpop.permute.xlu0 %1507
          %1509 = vrot.lane.b32.xlu0 %v1393, 64
          %v1510 = vpop.permute.xlu0 %1509
          %1511 = vrot.lane.b32.xlu0 %v1398, 64
          %v1512 = vpop.permute.xlu0 %1511
          %1513 = vrot.lane.b32.xlu0 %v1399, 64
          %v1514 = vpop.permute.xlu0 %1513
          %1515 = vrot.lane.b32.xlu0 %v1404, 64
          %v1516 = vpop.permute.xlu0 %1515
          %1517 = vrot.lane.b32.xlu0 %v1405, 64
          %v1518 = vpop.permute.xlu0 %1517
          %1519 = vrot.lane.b32.xlu0 %v1410, 64
          %v1520 = vpop.permute.xlu0 %1519
          %1521 = vrot.lane.b32.xlu0 %v1411, 64
          %v1522 = vpop.permute.xlu0 %1521
          %1523 = vrot.lane.b32.xlu0 %v1416, 64
          %v1524 = vpop.permute.xlu0 %1523
          %1525 = vrot.lane.b32.xlu0 %v1417, 64
          %v1526 = vpop.permute.xlu0 %1525
          %1527 = vrot.lane.b32.xlu0 %v1422, 64
          %v1528 = vpop.permute.xlu0 %1527
          %1529 = vrot.lane.b32.xlu0 %v1423, 64
          %v1530 = vpop.permute.xlu0 %1529
          %1531 = vrot.lane.b32.xlu0 %v1428, 64
          %v1532 = vpop.permute.xlu0 %1531
          %1533 = vrot.lane.b32.xlu0 %v1429, 64
          %v1534 = vpop.permute.xlu0 %1533
          %1535 = vrot.lane.b32.xlu0 %v1433, 64
          %v1536 = vpop.permute.xlu0 %1535
          %1537 = vrot.lane.b32.xlu0 %v1434, 64
          %v1538 = vpop.permute.xlu0 %1537
          %vm1539 = vcmask 523264
          %v1540 = vsel %vm1539, %v1476, %v1478
          %v1541 = vsel %vm1539, %v1480, %v1482
          %v1542 = vsel %vm1539, %v1484, %v1486
          %v1543 = vsel %vm1539, %v1488, %v1490
          %v1544 = vsel %vm1539, %v1492, %v1494
          %v1545 = vsel %vm1539, %v1496, %v1498
          %v1546 = vsel %vm1539, %v1500, %v1502
          %v1547 = vsel %vm1539, %v1504, %v1506
          %v1548 = vsel %vm1539, %v1508, %v1510
          %v1549 = vsel %vm1539, %v1512, %v1514
          %v1550 = vsel %vm1539, %v1516, %v1518
          %v1551 = vsel %vm1539, %v1520, %v1522
          %v1552 = vsel %vm1539, %v1524, %v1526
          %v1553 = vsel %vm1539, %v1528, %v1530
          %v1554 = vsel %vm1539, %v1532, %v1534
          %v1555 = vsel %vm1539, %v1536, %v1538
          %v1588 = vadd.f32 %v1345, %v1540
          %v1589 = vadd.f32 %v1346, %v1478
          %v1590 = vadd.f32 %v1347, %v1541
          %v1591 = vadd.f32 %v1348, %v1482
          %v1592 = vadd.f32 %v1350, %v1542
          %v1593 = vadd.f32 %v1351, %v1486
          %v1594 = vadd.f32 %v1355, %v1543
          %v1595 = vadd.f32 %v1356, %v1490
          %v1596 = vadd.f32 %v1361, %v1544
          %v1597 = vadd.f32 %v1362, %v1494
          %v1598 = vadd.f32 %v1367, %v1545
          %v1599 = vadd.f32 %v1368, %v1498
          %v1600 = vadd.f32 %v1373, %v1546
          %v1601 = vadd.f32 %v1374, %v1502
          %v1602 = vadd.f32 %v1379, %v1547
          %v1603 = vadd.f32 %v1380, %v1506
          %v1604 = vadd.f32 %v1385, %v1548
          %v1605 = vadd.f32 %v1386, %v1510
          %v1606 = vadd.f32 %v1391, %v1549
          %v1607 = vadd.f32 %v1392, %v1514
          %v1608 = vadd.f32 %v1397, %v1550
          %v1609 = vadd.f32 %v1398, %v1518
          %v1610 = vadd.f32 %v1403, %v1551
          %v1611 = vadd.f32 %v1404, %v1522
          %v1612 = vadd.f32 %v1409, %v1552
          %v1613 = vadd.f32 %v1410, %v1526
          %v1614 = vadd.f32 %v1415, %v1553
          %v1615 = vadd.f32 %v1416, %v1530
          %v1616 = vadd.f32 %v1421, %v1554
          %v1617 = vadd.f32 %v1422, %v1534
          %v1618 = vadd.f32 %v1427, %v1555
          %v1619 = vadd.f32 %v1428, %v1538
          %v1620 = vadd.f32 %v1588, %v1353
          %v1621 = vadd.f32 %v1589, %v1354
          %v1622 = vadd.f32 %v1590, %v1358
          %v1623 = vadd.f32 %v1591, %v1359
          %v1624 = vadd.f32 %v1592, %v1364
          %v1625 = vadd.f32 %v1593, %v1365
          %v1626 = vadd.f32 %v1594, %v1370
          %v1627 = vadd.f32 %v1595, %v1371
          %v1628 = vadd.f32 %v1596, %v1376
          %v1629 = vadd.f32 %v1597, %v1377
          %v1630 = vadd.f32 %v1598, %v1382
          %v1631 = vadd.f32 %v1599, %v1383
          %v1632 = vadd.f32 %v1600, %v1388
          %v1633 = vadd.f32 %v1601, %v1389
          %v1634 = vadd.f32 %v1602, %v1394
          %v1635 = vadd.f32 %v1603, %v1395
          %v1636 = vadd.f32 %v1604, %v1400
          %v1637 = vadd.f32 %v1605, %v1401
          %v1638 = vadd.f32 %v1606, %v1406
          %v1639 = vadd.f32 %v1607, %v1407
          %v1640 = vadd.f32 %v1608, %v1412
          %v1641 = vadd.f32 %v1609, %v1413
          %v1642 = vadd.f32 %v1610, %v1418
          %v1643 = vadd.f32 %v1611, %v1419
          %v1644 = vadd.f32 %v1612, %v1424
          %v1645 = vadd.f32 %v1613, %v1425
          %v1646 = vadd.f32 %v1614, %v1430
          %v1647 = vadd.f32 %v1615, %v1431
          %v1648 = vadd.f32 %v1616, %v1435
          %v1649 = vadd.f32 %v1617, %v1436
          %v1650 = vadd.f32 %v1618, %v1438
          %v1651 = vadd.f32 %v1619, %v1439
          %1684 = vrot.lane.b32.xlu0 %v1359, 64
          %v1685 = vpop.permute.xlu0 %1684
          %1686 = vrot.lane.b32.xlu0 %v1360, 64
          %v1687 = vpop.permute.xlu0 %1686
          %1688 = vrot.lane.b32.xlu0 %v1365, 64
          %v1689 = vpop.permute.xlu0 %1688
          %1690 = vrot.lane.b32.xlu0 %v1366, 64
          %v1691 = vpop.permute.xlu0 %1690
          %1692 = vrot.lane.b32.xlu0 %v1371, 64
          %v1693 = vpop.permute.xlu0 %1692
          %1694 = vrot.lane.b32.xlu0 %v1372, 64
          %v1695 = vpop.permute.xlu0 %1694
          %1696 = vrot.lane.b32.xlu0 %v1377, 64
          %v1697 = vpop.permute.xlu0 %1696
          %1698 = vrot.lane.b32.xlu0 %v1378, 64
          %v1699 = vpop.permute.xlu0 %1698
          %1700 = vrot.lane.b32.xlu0 %v1383, 64
          %v1701 = vpop.permute.xlu0 %1700
          %1702 = vrot.lane.b32.xlu0 %v1384, 64
          %v1703 = vpop.permute.xlu0 %1702
          %1704 = vrot.lane.b32.xlu0 %v1389, 64
          %v1705 = vpop.permute.xlu0 %1704
          %1706 = vrot.lane.b32.xlu0 %v1390, 64
          %v1707 = vpop.permute.xlu0 %1706
          %1708 = vrot.lane.b32.xlu0 %v1395, 64
          %v1709 = vpop.permute.xlu0 %1708
          %1710 = vrot.lane.b32.xlu0 %v1396, 64
          %v1711 = vpop.permute.xlu0 %1710
          %1712 = vrot.lane.b32.xlu0 %v1401, 64
          %v1713 = vpop.permute.xlu0 %1712
          %1714 = vrot.lane.b32.xlu0 %v1402, 64
          %v1715 = vpop.permute.xlu0 %1714
          %1716 = vrot.lane.b32.xlu0 %v1407, 64
          %v1717 = vpop.permute.xlu0 %1716
          %1718 = vrot.lane.b32.xlu0 %v1408, 64
          %v1719 = vpop.permute.xlu0 %1718
          %1720 = vrot.lane.b32.xlu0 %v1413, 64
          %v1721 = vpop.permute.xlu0 %1720
          %1722 = vrot.lane.b32.xlu0 %v1414, 64
          %v1723 = vpop.permute.xlu0 %1722
          %1724 = vrot.lane.b32.xlu0 %v1419, 64
          %v1725 = vpop.permute.xlu0 %1724
          %1726 = vrot.lane.b32.xlu0 %v1420, 64
          %v1727 = vpop.permute.xlu0 %1726
          %1728 = vrot.lane.b32.xlu0 %v1425, 64
          %v1729 = vpop.permute.xlu0 %1728
          %1730 = vrot.lane.b32.xlu0 %v1426, 64
          %v1731 = vpop.permute.xlu0 %1730
          %1732 = vrot.lane.b32.xlu0 %v1431, 64
          %v1733 = vpop.permute.xlu0 %1732
          %1734 = vrot.lane.b32.xlu0 %v1432, 64
          %v1735 = vpop.permute.xlu0 %1734
          %1736 = vrot.lane.b32.xlu0 %v1436, 64
          %v1737 = vpop.permute.xlu0 %1736
          %1738 = vrot.lane.b32.xlu0 %v1437, 64
          %v1739 = vpop.permute.xlu0 %1738
          %1740 = vrot.lane.b32.xlu0 %v1439, 64
          %v1741 = vpop.permute.xlu0 %1740
          %1742 = vrot.lane.b32.xlu0 %v1440, 64
          %v1743 = vpop.permute.xlu0 %1742
          %1744 = vrot.lane.b32.xlu0 %v1441, 64
          %v1745 = vpop.permute.xlu0 %1744
          %1746 = vrot.lane.b32.xlu0 %v1442, 64
          %v1747 = vpop.permute.xlu0 %1746
          %v1748 = vsel %vm1539, %v1685, %v1687
          %v1749 = vsel %vm1539, %v1689, %v1691
          %v1750 = vsel %vm1539, %v1693, %v1695
          %v1751 = vsel %vm1539, %v1697, %v1699
          %v1752 = vsel %vm1539, %v1701, %v1703
          %v1753 = vsel %vm1539, %v1705, %v1707
          %v1754 = vsel %vm1539, %v1709, %v1711
          %v1755 = vsel %vm1539, %v1713, %v1715
          %v1756 = vsel %vm1539, %v1717, %v1719
          %v1757 = vsel %vm1539, %v1721, %v1723
          %v1758 = vsel %vm1539, %v1725, %v1727
          %v1759 = vsel %vm1539, %v1729, %v1731
          %v1760 = vsel %vm1539, %v1733, %v1735
          %v1761 = vsel %vm1539, %v1737, %v1739
          %v1762 = vsel %vm1539, %v1741, %v1743
          %v1763 = vsel %vm1539, %v1745, %v1747
          %v1796 = vadd.f32 %v1620, %v1748
          %v1797 = vadd.f32 %v1621, %v1687
          %v1798 = vadd.f32 %v1622, %v1749
          %v1799 = vadd.f32 %v1623, %v1691
          %v1800 = vadd.f32 %v1624, %v1750
          %v1801 = vadd.f32 %v1625, %v1695
          %v1802 = vadd.f32 %v1626, %v1751
          %v1803 = vadd.f32 %v1627, %v1699
          %v1804 = vadd.f32 %v1628, %v1752
          %v1805 = vadd.f32 %v1629, %v1703
          %v1806 = vadd.f32 %v1630, %v1753
          %v1807 = vadd.f32 %v1631, %v1707
          %v1808 = vadd.f32 %v1632, %v1754
          %v1809 = vadd.f32 %v1633, %v1711
          %v1810 = vadd.f32 %v1634, %v1755
          %v1811 = vadd.f32 %v1635, %v1715
          %v1812 = vadd.f32 %v1636, %v1756
          %v1813 = vadd.f32 %v1637, %v1719
          %v1814 = vadd.f32 %v1638, %v1757
          %v1815 = vadd.f32 %v1639, %v1723
          %v1816 = vadd.f32 %v1640, %v1758
          %v1817 = vadd.f32 %v1641, %v1727
          %v1818 = vadd.f32 %v1642, %v1759
          %v1819 = vadd.f32 %v1643, %v1731
          %v1820 = vadd.f32 %v1644, %v1760
          %v1821 = vadd.f32 %v1645, %v1735
          %v1822 = vadd.f32 %v1646, %v1761
          %v1823 = vadd.f32 %v1647, %v1739
          %v1824 = vadd.f32 %v1648, %v1762
          %v1825 = vadd.f32 %v1649, %v1743
          %v1826 = vadd.f32 %v1650, %v1763
          %v1827 = vadd.f32 %v1651, %v1747
          %v1828 = vld [vmem:[#allocation8] sm:$0x3]
          %v1830 = vperm.slane %v1828, 0
          %v1831 = vperm.slane %v1828, 1
          %v1834 = vadd.f32 %v1796, %v1830
          %v1835 = vadd.f32 %v1797, %v1831
          %v1836 = vadd.f32 %v1798, %v1830
          %v1837 = vadd.f32 %v1799, %v1831
          %v1838 = vadd.f32 %v1800, %v1830
          %v1839 = vadd.f32 %v1801, %v1831
          %v1840 = vadd.f32 %v1802, %v1830
          %v1841 = vadd.f32 %v1803, %v1831
          %v1842 = vadd.f32 %v1804, %v1830
          %v1843 = vadd.f32 %v1805, %v1831
          %v1844 = vadd.f32 %v1806, %v1830
          %v1845 = vadd.f32 %v1807, %v1831
          %v1846 = vadd.f32 %v1808, %v1830
          %v1847 = vadd.f32 %v1809, %v1831
          %v1848 = vadd.f32 %v1810, %v1830
          %v1849 = vadd.f32 %v1811, %v1831
          %v1850 = vadd.f32 %v1812, %v1830
          %v1851 = vadd.f32 %v1813, %v1831
          %v1852 = vadd.f32 %v1814, %v1830
          %v1853 = vadd.f32 %v1815, %v1831
          %v1854 = vadd.f32 %v1816, %v1830
          %v1855 = vadd.f32 %v1817, %v1831
          %v1856 = vadd.f32 %v1818, %v1830
          %v1857 = vadd.f32 %v1819, %v1831
          %v1858 = vadd.f32 %v1820, %v1830
          %v1859 = vadd.f32 %v1821, %v1831
          %v1860 = vadd.f32 %v1822, %v1830
          %v1861 = vadd.f32 %v1823, %v1831
          %v1862 = vadd.f32 %v1824, %v1830
          %v1863 = vadd.f32 %v1825, %v1831
          %v1864 = vadd.f32 %v1826, %v1830
          %v1865 = vadd.f32 %v1827, %v1831
          %v1866 = vmax.f32 %v1834, 0.0
          %v1867 = vmax.f32 %v1835, 0.0
          %v1868 = vmax.f32 %v1836, 0.0
          %v1869 = vmax.f32 %v1837, 0.0
          %v1870 = vmax.f32 %v1838, 0.0
          %v1871 = vmax.f32 %v1839, 0.0
          %v1872 = vmax.f32 %v1840, 0.0
          %v1873 = vmax.f32 %v1841, 0.0
          %v1874 = vmax.f32 %v1842, 0.0
          %v1875 = vmax.f32 %v1843, 0.0
          %v1876 = vmax.f32 %v1844, 0.0
          %v1877 = vmax.f32 %v1845, 0.0
          %v1878 = vmax.f32 %v1846, 0.0
          %v1879 = vmax.f32 %v1847, 0.0
          %v1880 = vmax.f32 %v1848, 0.0
          %v1881 = vmax.f32 %v1849, 0.0
          %v1882 = vmax.f32 %v1850, 0.0
          %v1883 = vmax.f32 %v1851, 0.0
          %v1884 = vmax.f32 %v1852, 0.0
          %v1885 = vmax.f32 %v1853, 0.0
          %v1886 = vmax.f32 %v1854, 0.0
          %v1887 = vmax.f32 %v1855, 0.0
          %v1888 = vmax.f32 %v1856, 0.0
          %v1889 = vmax.f32 %v1857, 0.0
          %v1890 = vmax.f32 %v1858, 0.0
          %v1891 = vmax.f32 %v1859, 0.0
          %v1892 = vmax.f32 %v1860, 0.0
          %v1893 = vmax.f32 %v1861, 0.0
          %v1894 = vmax.f32 %v1862, 0.0
          %v1895 = vmax.f32 %v1863, 0.0
          %v1896 = vmax.f32 %v1864, 0.0
          %v1897 = vmax.f32 %v1865, 0.0
          %v1898 = vlaneseq
          %v1899 = vand.u32 %v1898, 127
          %v1900 = vadd.s32 %v1899, 128
          %vm1901 = vcmp.lt.s32.totalorder %v1899, 64
          %vm1902 = vcmp.lt.s32.totalorder %v1900, 64
          %vm1903 = vcmp.lt.s32.totalorder %v1899, 128
          %vm1904 = vcmp.lt.s32.totalorder %v1900, 128
          %v1905 = vsel %vm1903, 13, 12
          %v1906 = vsel %vm1904, 13, 12
          %v1907 = vsel %vm1901, 14, %v1905
          %v1908 = vsel %vm1902, 14, %v1906
          %vm1909 = vcmp.ge.s32.totalorder %v1907, 0
          %vm1910 = vcmp.ge.s32.totalorder %v1908, 0
          %vm1911 = vcmp.ge.s32.totalorder %v1907, 1
          %vm1912 = vcmp.ge.s32.totalorder %v1908, 1
          %vm1913 = vcmp.ge.s32.totalorder %v1907, 2
          %vm1914 = vcmp.ge.s32.totalorder %v1908, 2
          %vm1915 = vcmp.ge.s32.totalorder %v1907, 3
          %vm1916 = vcmp.ge.s32.totalorder %v1908, 3
          %vm1917 = vcmp.ge.s32.totalorder %v1907, 4
          %vm1918 = vcmp.ge.s32.totalorder %v1908, 4
          %vm1919 = vcmp.ge.s32.totalorder %v1907, 5
          %vm1920 = vcmp.ge.s32.totalorder %v1908, 5
          %vm1921 = vcmp.ge.s32.totalorder %v1907, 6
          %vm1922 = vcmp.ge.s32.totalorder %v1908, 6
          %vm1923 = vcmp.ge.s32.totalorder %v1907, 7
          %vm1924 = vcmp.ge.s32.totalorder %v1908, 7
          %vm1925 = vcmp.ge.s32.totalorder %v1907, 8
          %vm1926 = vcmp.ge.s32.totalorder %v1908, 8
          %vm1927 = vcmp.ge.s32.totalorder %v1907, 9
          %vm1928 = vcmp.ge.s32.totalorder %v1908, 9
          %vm1929 = vcmp.ge.s32.totalorder %v1907, 10
          %vm1930 = vcmp.ge.s32.totalorder %v1908, 10
          %vm1931 = vcmp.ge.s32.totalorder %v1907, 11
          %vm1932 = vcmp.ge.s32.totalorder %v1908, 11
          %vm1933 = vcmp.ge.s32.totalorder %v1907, 12
          %vm1934 = vcmp.ge.s32.totalorder %v1908, 12
          %vm1935 = vcmp.ge.s32.totalorder %v1907, 13
          %vm1936 = vcmp.ge.s32.totalorder %v1908, 13
          %vm1937 = vcmp.ge.s32.totalorder %v1907, 14
          %vm1938 = vcmp.ge.s32.totalorder %v1908, 14
          %vm1939 = vcmp.ge.s32.totalorder %v1907, 15
          %vm1940 = vcmp.ge.s32.totalorder %v1908, 15
          %v1941 = vsel %vm1909, 1, 0
          %v1942 = vsel %vm1910, 1, 0
          %v1943 = vsel %vm1911, 1, 0
          %v1944 = vsel %vm1912, 1, 0
          %v1945 = vsel %vm1913, 1, 0
          %v1946 = vsel %vm1914, 1, 0
          %v1947 = vsel %vm1915, 1, 0
          %v1948 = vsel %vm1916, 1, 0
          %v1949 = vsel %vm1917, 1, 0
          %v1950 = vsel %vm1918, 1, 0
          %v1951 = vsel %vm1919, 1, 0
          %v1952 = vsel %vm1920, 1, 0
          %v1953 = vsel %vm1921, 1, 0
          %v1954 = vsel %vm1922, 1, 0
          %v1955 = vsel %vm1923, 1, 0
          %v1956 = vsel %vm1924, 1, 0
          %v1957 = vsel %vm1925, 1, 0
          %v1958 = vsel %vm1926, 1, 0
          %v1959 = vsel %vm1927, 1, 0
          %v1960 = vsel %vm1928, 1, 0
          %v1961 = vsel %vm1929, 1, 0
          %v1962 = vsel %vm1930, 1, 0
          %v1963 = vsel %vm1931, 1, 0
          %v1964 = vsel %vm1932, 1, 0
          %v1965 = vsel %vm1933, 1, 0
          %v1966 = vsel %vm1934, 1, 0
          %v1967 = vsel %vm1935, 1, 0
          %v1968 = vsel %vm1936, 1, 0
          %v1969 = vsel %vm1937, 1, 0
          %v1970 = vsel %vm1938, 1, 0
          %v1971 = vsel %vm1939, 1, 0
          %v1972 = vsel %vm1940, 1, 0
          %vm1973 = vcmp.eq.s32.totalorder %v1941, 1
          %vm1974 = vcmp.eq.s32.totalorder %v1942, 1
          %vm1975 = vcmp.eq.s32.totalorder %v1943, 1
          %vm1976 = vcmp.eq.s32.totalorder %v1944, 1
          %vm1977 = vcmp.eq.s32.totalorder %v1945, 1
          %vm1978 = vcmp.eq.s32.totalorder %v1946, 1
          %vm1979 = vcmp.eq.s32.totalorder %v1947, 1
          %vm1980 = vcmp.eq.s32.totalorder %v1948, 1
          %vm1981 = vcmp.eq.s32.totalorder %v1949, 1
          %vm1982 = vcmp.eq.s32.totalorder %v1950, 1
          %vm1983 = vcmp.eq.s32.totalorder %v1951, 1
          %vm1984 = vcmp.eq.s32.totalorder %v1952, 1
          %vm1985 = vcmp.eq.s32.totalorder %v1953, 1
          %vm1986 = vcmp.eq.s32.totalorder %v1954, 1
          %vm1987 = vcmp.eq.s32.totalorder %v1955, 1
          %vm1988 = vcmp.eq.s32.totalorder %v1956, 1
          %vm1989 = vcmp.eq.s32.totalorder %v1957, 1
          %vm1990 = vcmp.eq.s32.totalorder %v1958, 1
          %vm1991 = vcmp.eq.s32.totalorder %v1959, 1
          %vm1992 = vcmp.eq.s32.totalorder %v1960, 1
          %vm1993 = vcmp.eq.s32.totalorder %v1961, 1
          %vm1994 = vcmp.eq.s32.totalorder %v1962, 1
          %vm1995 = vcmp.eq.s32.totalorder %v1963, 1
          %vm1996 = vcmp.eq.s32.totalorder %v1964, 1
          %vm1997 = vcmp.eq.s32.totalorder %v1965, 1
          %vm1998 = vcmp.eq.s32.totalorder %v1966, 1
          %vm1999 = vcmp.eq.s32.totalorder %v1967, 1
          %vm2000 = vcmp.eq.s32.totalorder %v1968, 1
          %vm2001 = vcmp.eq.s32.totalorder %v1969, 1
          %vm2002 = vcmp.eq.s32.totalorder %v1970, 1
          %vm2003 = vcmp.eq.s32.totalorder %v1971, 1
          %vm2004 = vcmp.eq.s32.totalorder %v1972, 1
          %v2005 = vsel %vm1973, %v1866, 0.0
          %v2006 = vsel %vm1974, %v1867, 0.0
          %v2007 = vsel %vm1975, %v1868, 0.0
          %v2008 = vsel %vm1976, %v1869, 0.0
          %v2009 = vsel %vm1977, %v1870, 0.0
          %v2010 = vsel %vm1978, %v1871, 0.0
          %v2011 = vsel %vm1979, %v1872, 0.0
          %v2012 = vsel %vm1980, %v1873, 0.0
          %v2013 = vsel %vm1981, %v1874, 0.0
          %v2014 = vsel %vm1982, %v1875, 0.0
          %v2015 = vsel %vm1983, %v1876, 0.0
          %v2016 = vsel %vm1984, %v1877, 0.0
          %v2017 = vsel %vm1985, %v1878, 0.0
          %v2018 = vsel %vm1986, %v1879, 0.0
          %v2019 = vsel %vm1987, %v1880, 0.0
          %v2020 = vsel %vm1988, %v1881, 0.0
          %v2021 = vsel %vm1989, %v1882, 0.0
          %v2022 = vsel %vm1990, %v1883, 0.0
          %v2023 = vsel %vm1991, %v1884, 0.0
          %v2024 = vsel %vm1992, %v1885, 0.0
          %v2025 = vsel %vm1993, %v1886, 0.0
          %v2026 = vsel %vm1994, %v1887, 0.0
          %v2027 = vsel %vm1995, %v1888, 0.0
          %v2028 = vsel %vm1996, %v1889, 0.0
          %v2029 = vsel %vm1997, %v1890, 0.0
          %v2030 = vsel %vm1998, %v1891, 0.0
          %v2031 = vsel %vm1999, %v1892, 0.0
          %v2032 = vsel %vm2000, %v1893, 0.0
          %v2033 = vsel %vm2001, %v1894, 0.0
          %v2034 = vsel %vm2002, %v1895, 0.0
          %v2035 = vsel %vm2003, %v1896, 0.0
          %v2036 = vsel %vm2004, %v1897, 0.0
          %v2037 = vmax.f32 %v2005, %v2009
          %v2038 = vmax.f32 %v2007, %v2011
          %v2039 = vmax.f32 %v2037, %v2013
          %v2040 = vmax.f32 %v2038, %v2015
          %v2041 = vmax.f32 %v2039, %v2017
          %v2042 = vmax.f32 %v2040, %v2019
          %v2043 = vmax.f32 %v2041, %v2021
          %v2044 = vmax.f32 %v2042, %v2023
          %v2045 = vmax.f32 %v2043, %v2025
          %v2046 = vmax.f32 %v2044, %v2027
          %v2047 = vmax.f32 %v2045, %v2029
          %v2048 = vmax.f32 %v2046, %v2031
          %v2049 = vmax.f32 %v2047, %v2033
          %v2050 = vmax.f32 %v2048, %v2035
          %v2051 = vmax.f32 %v2049, %v2050
          %v2052 = vsel %vm1539, %v2006, -inf
          %v2053 = vsel %vm1539, %v2008, -inf
          %v2054 = vsel %vm1539, %v2010, -inf
          %v2055 = vmax.f32 %v2052, %v2054
          %v2056 = vsel %vm1539, %v2012, -inf
          %v2057 = vmax.f32 %v2053, %v2056
          %v2058 = vsel %vm1539, %v2014, -inf
          %v2059 = vmax.f32 %v2055, %v2058
          %v2060 = vsel %vm1539, %v2016, -inf
          %v2061 = vmax.f32 %v2057, %v2060
          %v2062 = vsel %vm1539, %v2018, -inf
          %v2063 = vmax.f32 %v2059, %v2062
          %v2064 = vsel %vm1539, %v2020, -inf
          %v2065 = vmax.f32 %v2061, %v2064
          %v2066 = vsel %vm1539, %v2022, -inf
          %v2067 = vmax.f32 %v2063, %v2066
          %v2068 = vsel %vm1539, %v2024, -inf
          %v2069 = vmax.f32 %v2065, %v2068
          %v2070 = vsel %vm1539, %v2026, -inf
          %v2071 = vmax.f32 %v2067, %v2070
          %v2072 = vsel %vm1539, %v2028, -inf
          %v2073 = vmax.f32 %v2069, %v2072
          %v2074 = vsel %vm1539, %v2030, -inf
          %v2075 = vmax.f32 %v2071, %v2074
          %v2076 = vsel %vm1539, %v2032, -inf
          %v2077 = vmax.f32 %v2073, %v2076
          %v2078 = vsel %vm1539, %v2034, -inf
          %v2079 = vmax.f32 %v2075, %v2078
          %v2080 = vsel %vm1539, %v2036, -inf
          %v2081 = vmax.f32 %v2077, %v2080
          %v2082 = vmax.f32 %v2079, %v2081
          %v2083 = vld [vmem:[#allocation9] sm:$0xff]
          %v2084 = vld [vmem:[#allocation9 + $0x8] sm:$0xff]
          %v2085 = vld [vmem:[#allocation9 + $0x10] sm:$0xff]
          %v2086 = vld [vmem:[#allocation9 + $0x18] sm:$0xff]
          %v2087 = vld [vmem:[#allocation9 + $0x20] sm:$0xff]
          %v2088 = vld [vmem:[#allocation9 + $0x28] sm:$0xff]
          %v2089 = vld [vmem:[#allocation9 + $0x30] sm:$0xff]
          %v2090 = vld [vmem:[#allocation9 + $0x38] sm:$0xff]
          %v2091 = vld [vmem:[#allocation9 + $0x40] sm:$0xff]
          %v2092 = vld [vmem:[#allocation9 + $0x48] sm:$0xff]
          %v2093 = vld [vmem:[#allocation9 + $0x50] sm:$0xff]
          %v2094 = vld [vmem:[#allocation9 + $0x58] sm:$0xff]
          %v2095 = vld [vmem:[#allocation9 + $0x60] sm:$0xff]
          %v2096 = vld [vmem:[#allocation9 + $0x68] sm:$0xff]
          %v2097 = vld [vmem:[#allocation9 + $0x70] sm:$0xff]
          %v2098 = vld [vmem:[#allocation9 + $0x78] sm:$0xff]
          %v2099 = vld [vmem:[#allocation9 + $0x80] sm:$0xff]
          %v2100 = vld [vmem:[#allocation9 + $0x88] sm:$0xff]
          %v2101 = vld [vmem:[#allocation9 + $0x90] sm:$0xff]
          %v2102 = vld [vmem:[#allocation9 + $0x98] sm:$0xff]
          %v2103 = vld [vmem:[#allocation9 + $0xa0] sm:$0xff]
          %v2104 = vld [vmem:[#allocation9 + $0xa8] sm:$0xff]
          %v2105 = vld [vmem:[#allocation9 + $0xb0] sm:$0xff]
          %v2106 = vld [vmem:[#allocation9 + $0xb8] sm:$0xff]
          %v2107 = vld [vmem:[%s4] sm:$0x1]
          %v2109 = vperm.slane %v2107, 0
          %v2112 = vsel %vm1539, %v2082, 0
          %2114 = vmatpush.msra.mxu0 %v2098
          %2115 = vmatpush.msra.mxu0 %v2097
          %2116 = vmatpush.msra.mxu0 %v2096
          %2117 = vmatpush.msra.mxu0 %v2095
          %2118 = vmatpush.msra.mxu0 %v2094
          %2119 = vmatpush.msra.mxu0 %v2093
          %2120 = vmatpush.msra.mxu0 %v2092
          %2121 = vmatpush.msra.mxu0 %v2091
          %2122 = vmatpush.msra.mxu0 %v2090
          %2123 = vmatpush.msra.mxu0 %v2089
          %2124 = vmatpush.msra.mxu0 %v2088
          %2125 = vmatpush.msra.mxu0 %v2087
          %2126 = vmatpush.msra.mxu0 %v2086
          %2127 = vmatpush.msra.mxu0 %v2085
          %2128 = vmatpush.msra.mxu0 %v2084
          %2129 = vmatpush.msra.mxu0 %v2083
          %2130 = vmatmul.f32.gmra.mxu0 %v2051
          %v2131 = vpop.f32.mrf.mxu0
          %v2132 = vadd.f32 %v2109, %v2131
          %2133 = vdwg.mxu0
          %2134 = vmatpush.msra.mxu0 0.0
          %2135 = vmatpush.msra.mxu0 0.0
          %2136 = vmatpush.msra.mxu0 0.0
          %2137 = vmatpush.msra.mxu0 0.0
          %2138 = vmatpush.msra.mxu0 0.0
          %2139 = vmatpush.msra.mxu0 0.0
          %2140 = vmatpush.msra.mxu0 0.0
          %2141 = vmatpush.msra.mxu0 0.0
          %2142 = vmatpush.msra.mxu0 %v2106
          %2143 = vmatpush.msra.mxu0 %v2105
          %2144 = vmatpush.msra.mxu0 %v2104
          %2145 = vmatpush.msra.mxu0 %v2103
          %2146 = vmatpush.msra.mxu0 %v2102
          %2147 = vmatpush.msra.mxu0 %v2101
          %2148 = vmatpush.msra.mxu0 %v2100
          %2149 = vmatpush.msra.mxu0 %v2099
          %2150 = vmatmul.f32.gmra.mxu0 %v2112
          %v2151 = vpop.f32.mrf.mxu0
          %v2152 = vadd.f32 %v2132, %v2151
          %2153 = vdwg.mxu0
          %v2154 = vmax.f32 %v2152, 0.0
          %2155 = vst [vmem:[%s316] sm:$0xff] %v2154
        $region68: #{tpu_custom_call.1} parent=39 // pred_fallthru
          _
        %s2156 = sand.u32 %s161, 1
        %s2157 = scalar_lea.sflag [#allocation5], %s2156
        %s2158 = sand.u32 %s161, 1
        %s2159 = smul.addr %s2158, 8
        %s2160 = scalar_lea.vmem [#allocation11], %s2159
        // Predicated region
        $region69: #{tpu_custom_call.1} parent=39 // pred_check
          %p2161 = pneg %p171
        $region70: #{tpu_custom_call.1} parent=39 // pred_check_branch
          %2163 = sbr.rel (%p2161) target = $region72
        $region71: #{tpu_custom_call.1} parent=39 // pred_region
          %2165 = vsyncadd %s2157, 0
          %s2166 = smul.addr %s28, 8
          %s2167 = scalar_lea.hbm %s5, %s2166
          %s2169 = sshll.u32 %s2160, 4
          %s2170 = int_to_ptr.vmem [resolvable:$true] %s2169
          %s2171 = sshll.u32 %s2167, 4
          %s2172 = int_to_ptr.hbm [resolvable:$true] %s2171
          %2174 = dma.vmem_to_hbm [thread:$0]  %s2170, 128, %s2172, %s2157
        $region72: #{tpu_custom_call.1} parent=39 // pred_fallthru
          _
      $region40: #{tpu_custom_call.1} parent=5 // pred_fallthru
        _
      %p2175 = scmp.le.s32.totalorder 2, %s19
      // Predicated region
      $region73: #{tpu_custom_call.1} parent=5 // pred_check
        %p2176 = pneg %p2175
      $region74: #{tpu_custom_call.1} parent=5 // pred_check_branch
        %2178 = sbr.rel (%p2176) target = $region76
      $region75: #{tpu_custom_call.1} parent=5 // pred_region
        %s2179 = ssub.s32 %s19, 2
        // Predicated region
        $region77: #{tpu_custom_call.1} parent=75 // pred_check
          %p2180 = pneg %p177
        $region78: #{tpu_custom_call.1} parent=75 // pred_check_branch
          %2182 = sbr.rel (%p2180) target = $region80
        $region79: #{tpu_custom_call.1} parent=75 // pred_region
          %s2183 = sand.u32 %s162, 1
          %s2184 = scalar_lea.sflag [#allocation5], %s2183
          %s2185 = sand.u32 %s162, 1
          %s2186 = smul.addr %s2185, 8
          %s2187 = scalar_lea.vmem [#allocation11], %s2186
          %2189 = dma.done %s2184, 128
        $region80: #{tpu_custom_call.1} parent=75 // pred_fallthru
          _
      $region76: #{tpu_custom_call.1} parent=5 // pred_fallthru
        _
    $region6: #{tpu_custom_call.1} parent=1 // loop_footer
      %s23 = sadd.s32 1, %s19
    $region7: #{tpu_custom_call.1} parent=1 // loop_footer_branch
      %18 = sbr.rel target = $region3
    $region8: #{tpu_custom_call.1} parent=1 // loop_exit
      _
    %2190 = vsyncpa [#allocation4], 1
    %s2191 = scalar_lea.sflag [#allocation4], 1
    %2192 = vsyncpa %s2191, 1
    %2193 = vsyncpa [#allocation7], 1
    %2194 = vsyncpa [#allocation10], 1
    %2195 = vsyncpa [#allocation5], 1
    %s2196 = scalar_lea.sflag [#allocation5], 1
    %2197 = vsyncpa %s2196, 1

</llo_original>
